<compile_context>
chip_gen: v7x
topology: tpu7x:2x2x1
jax: 0.10.0
libtpu: 0.0.40
codegen_flags: <defaults>
</compile_context>

<pallas_src>
import jax
import jax.numpy as jnp
from jax.experimental import pallas as pl
from jax.experimental.pallas import tpu as pltpu


def _lstm_cell(gates, c):
    """Apply LSTM nonlinearities for one step.

    gates: (1, 4H) pre-activations with columns ordered [i, f, o, g];
    c: (1, H) previous cell state.  sigmoid is applied once to the first 3H
    columns and tanh once to the last H columns.
    """
    H = c.shape[-1]
    sig = jax.nn.sigmoid(gates[:, :3 * H])          # [i | f | o]
    g = jnp.tanh(gates[:, 3 * H:])                  # g
    i = sig[:, 0 * H:1 * H]
    f = sig[:, 1 * H:2 * H]
    o = sig[:, 2 * H:3 * H]
    c_new = f * c + i * g
    h_new = o * jnp.tanh(c_new)
    return h_new, c_new


def textlstm_kernel(x_ref, wih1_ref, whh1_ref, b1_ref,
                    wih2_ref, whh2_ref, b2_ref,
                    wih3_ref, whh3_ref, b3_ref,
                    wlin_ref, blin_ref, out_ref, lasts_ref):
    N, _ = x_ref.shape
    H0 = whh1_ref.shape[0]
    H1 = whh2_ref.shape[0]
    H2 = whh3_ref.shape[0]

    # Layer-1 input projections for ALL sequence steps in one MXU call,
    # bias folded in (off the serial recurrence chain).
    pre1 = jnp.dot(x_ref[...], wih1_ref[...],
                   preferred_element_type=jnp.float32) + b1_ref[...]   # (N, 4H0)

    # Hoist recurrent / layer-2/3 weights and biases out of the unrolled loop
    # (JAX does not CSE ref loads). State temporaries are (1, H) after the
    # dead-row elimination, so vreg pressure stays low.
    whh1 = whh1_ref[...]
    wih2 = wih2_ref[...]; whh2 = whh2_ref[...]; b2 = b2_ref[...]
    wih3 = wih3_ref[...]; whh3 = whh3_ref[...]; b3 = b3_ref[...]

    h1 = jnp.zeros((1, H0), jnp.float32); c1 = jnp.zeros((1, H0), jnp.float32)
    h2 = jnp.zeros((1, H1), jnp.float32); c2 = jnp.zeros((1, H1), jnp.float32)
    h3 = jnp.zeros((1, H2), jnp.float32); c3 = jnp.zeros((1, H2), jnp.float32)

    # N (= input.size(0), the LSTM *sequence* axis under batch_first=False) is
    # small and static -> fully unroll in Python: static indices, and the LLO
    # scheduler sees the whole cross-timestep dependence chain.
    # For large N, switch to lax.fori_loop or a sequential grid carry.
    for n in range(N):
        g1 = pre1[n:n + 1, :] + jnp.dot(h1, whh1,
                                        preferred_element_type=jnp.float32)
        h1, c1 = _lstm_cell(g1, c1)

        g2 = (jnp.dot(h1, wih2, preferred_element_type=jnp.float32)
              + jnp.dot(h2, whh2, preferred_element_type=jnp.float32) + b2)
        h2, c2 = _lstm_cell(g2, c2)

        g3 = (jnp.dot(h2, wih3, preferred_element_type=jnp.float32)
              + jnp.dot(h3, whh3, preferred_element_type=jnp.float32) + b3)
        h3, c3 = _lstm_cell(g3, c3)

        # Only the surviving (dead-row-eliminated) row is kept; store it into
        # VMEM scratch so no values stay live to the end of the kernel.
        lasts_ref[pl.ds(n, 1), :] = h3                                  # (1, H2)

    # Deferred Linear: single (N, H2) x (H2, OUT) matmul + one output store.
    y = jnp.dot(lasts_ref[...], wlin_ref[...],
                preferred_element_type=jnp.float32) + blin_ref[...]
    out_ref[...] = y                                                    # (N, OUT)
    # TODO(synk): nn.Dropout is identity at inference; no mask applied here.


def _reorder_gates(a):
    """Reorder PyTorch gate columns [i, f, g, o] -> [i, f, o, g] (trace-time)."""
    H = a.shape[-1] // 4
    return jnp.concatenate([a[..., :2 * H], a[..., 3 * H:], a[..., 2 * H:3 * H]],
                           axis=-1)


def textlstm_forward(x_emb, params):
    """x_emb: (N, T, E) float32 embedded input. Returns (N, output_size)."""
    N, T, E = x_emb.shape
    (wih1, whh1, b1), (wih2, whh2, b2), (wih3, whh3, b3), (wlin, blin) = params
    OUT = wlin.shape[1]
    H2 = whh3.shape[0]

    # Gate-column permutation done once at trace time (free at runtime).
    wih1, whh1, b1 = _reorder_gates(wih1), _reorder_gates(whh1), _reorder_gates(b1)
    wih2, whh2, b2 = _reorder_gates(wih2), _reorder_gates(whh2), _reorder_gates(b2)
    wih3, whh3, b3 = _reorder_gates(wih3), _reorder_gates(whh3), _reorder_gates(b3)

    # Dead-row elimination: under batch_first=False the T axis is the LSTM
    # batch axis; batch rows never interact and only row T-1 reaches the output
    # (out[:, T-1, :]), so slicing here preserves the module's forward
    # semantics exactly while dropping (T-1)/T of the work.
    x_last = x_emb[:, T - 1, :]                                         # (N, E)

    inputs = (x_last, wih1, whh1, b1, wih2, whh2, b2, wih3, whh3, b3, wlin, blin)
    vmem = lambda: pl.BlockSpec(memory_space=pltpu.MemorySpace.VMEM)

    return pl.pallas_call(
        textlstm_kernel,
        out_shape=jax.ShapeDtypeStruct((N, OUT), jnp.float32),
        in_specs=[vmem() for _ in inputs],
        out_specs=vmem(),
        scratch_shapes=[pltpu.VMEM((N, H2), jnp.float32)],
    )(*inputs)


# ---------------- pure-JAX reference (for correctness check) ----------------
# Full-T computation in original PyTorch gate order [i, f, g, o]; verifies that
# the dead-row elimination + gate reorder in the kernel are semantics-preserving.
def _lstm_layer_ref(x_seq, wih, whh, b, H):
    # x_seq: (N, T, in); scan over seq axis N, batch axis T
    T = x_seq.shape[1]

    def step(carry, x_t):
        h, c = carry
        gates = x_t @ wih + h @ whh + b
        i = jax.nn.sigmoid(gates[:, 0 * H:1 * H])
        f = jax.nn.sigmoid(gates[:, 1 * H:2 * H])
        g = jnp.tanh(gates[:, 2 * H:3 * H])
        o = jax.nn.sigmoid(gates[:, 3 * H:4 * H])
        c_new = f * c + i * g
        h_new = o * jnp.tanh(c_new)
        return (h_new, c_new), h_new

    init = (jnp.zeros((T, H), jnp.float32), jnp.zeros((T, H), jnp.float32))
    _, hs = jax.lax.scan(step, init, x_seq)
    return hs  # (N, T, H)


def textlstm_ref(x_emb, params):
    (wih1, whh1, b1), (wih2, whh2, b2), (wih3, whh3, b3), (wlin, blin) = params
    out = _lstm_layer_ref(x_emb, wih1, whh1, b1, whh1.shape[0])
    out = _lstm_layer_ref(out, wih2, whh2, b2, whh2.shape[0])
    out = _lstm_layer_ref(out, wih3, whh3, b3, whh3.shape[0])
    out = out[:, out.shape[1] - 1, :]
    return out @ wlin + blin


if __name__ == "__main__":
    # Small shapes consistent with the module.
    N = 4                 # input.size(0) -> LSTM sequence length
    T = 8                 # timesteps     -> LSTM batch axis
    E = 32                # embedding_dim
    HID = (32, 32, 32)    # hidden_size list
    OUT = 8               # output_size
    VOCAB = 50

    key = jax.random.PRNGKey(0)
    ks = jax.random.split(key, 16)

    # Deterministic synthetic parameters (PyTorch LSTM shapes, pre-transposed for
    # right-multiplication; b = b_ih + b_hh folded).
    def lstm_params(kw, kr, kb, in_dim, H):
        wih = jax.random.normal(kw, (in_dim, 4 * H), jnp.float32) * 0.1
        whh = jax.random.normal(kr, (H, 4 * H), jnp.float32) * 0.1
        b = jax.random.normal(kb, (1, 4 * H), jnp.float32) * 0.1
        return wih, whh, b

    p1 = lstm_params(ks[0], ks[1], ks[2], E, HID[0])
    p2 = lstm_params(ks[3], ks[4], ks[5], HID[0], HID[1])
    p3 = lstm_params(ks[6], ks[7], ks[8], HID[1], HID[2])
    wlin = jax.random.normal(ks[9], (HID[2], OUT), jnp.float32) * 0.1
    blin = jax.random.normal(ks[10], (1, OUT), jnp.float32) * 0.1
    params = (p1, p2, p3, (wlin, blin))

    # Synthetic embedding table + integer token input.
    # TODO(synk): the embedding lookup (gather) is done in plain JAX outside the kernel.
    emb_table = jax.random.normal(ks[11], (VOCAB, E), jnp.float32) * 0.1
    tokens = jax.random.randint(ks[12], (N, T), 0, VOCAB, jnp.int32)
    x_emb = jnp.take(emb_table, tokens, axis=0).astype(jnp.float32)  # (N, T, E)

    out = textlstm_forward(x_emb, params)
    out = jax.block_until_ready(out)

    ref = textlstm_ref(x_emb, params)
    assert out.shape == (N, OUT)
    assert jnp.allclose(out, ref, atol=1e-4, rtol=1e-4), "mismatch vs reference"

    print("KERNEL_OK")
</pallas_src>

<mosaic_0001>
module attributes {stable_mosaic.version = 11 : i64} {
  func.func @textlstm_kernel(%arg0: memref<4x32xf32, #tpu.memory_space<vmem>>, %arg1: memref<32x128xf32, #tpu.memory_space<vmem>>, %arg2: memref<32x128xf32, #tpu.memory_space<vmem>>, %arg3: memref<1x128xf32, #tpu.memory_space<vmem>>, %arg4: memref<32x128xf32, #tpu.memory_space<vmem>>, %arg5: memref<32x128xf32, #tpu.memory_space<vmem>>, %arg6: memref<1x128xf32, #tpu.memory_space<vmem>>, %arg7: memref<32x128xf32, #tpu.memory_space<vmem>>, %arg8: memref<32x128xf32, #tpu.memory_space<vmem>>, %arg9: memref<1x128xf32, #tpu.memory_space<vmem>>, %arg10: memref<32x8xf32, #tpu.memory_space<vmem>>, %arg11: memref<1x8xf32, #tpu.memory_space<vmem>>, %arg12: memref<4x8xf32, #tpu.memory_space<vmem>>, %arg13: memref<4x32xf32, #tpu.memory_space<vmem>>) attributes {dimension_semantics = [], scalar_prefetch = 0 : i64, scratch_operands = 1 : i64, tpu.core_type = #tpu.core_type<tc>} {
    %c0 = arith.constant 0 : index
    %c0_0 = arith.constant 0 : index
    %0 = vector.load %arg0[%c0, %c0_0] : memref<4x32xf32, #tpu.memory_space<vmem>>, vector<4x32xf32>
    %c0_1 = arith.constant 0 : index
    %c0_2 = arith.constant 0 : index
    %1 = vector.load %arg1[%c0_1, %c0_2] : memref<32x128xf32, #tpu.memory_space<vmem>>, vector<32x128xf32>
    %cst = arith.constant dense<0.000000e+00> : vector<4x128xf32>
    %2 = tpu.matmul %0, %1, %cst {dimension_numbers = #tpu.dot_dimension_numbers<[1], [0], [0], [1], [0, 0, 1, 1], [], []>} : vector<4x32xf32>, vector<32x128xf32>, vector<4x128xf32> -> vector<4x128xf32>
    %c0_3 = arith.constant 0 : index
    %c0_4 = arith.constant 0 : index
    %3 = vector.load %arg3[%c0_3, %c0_4] : memref<1x128xf32, #tpu.memory_space<vmem>>, vector<1x128xf32>
    %4 = vector.broadcast %3 : vector<1x128xf32> to vector<4x128xf32>
    %5 = arith.addf %2, %4 : vector<4x128xf32>
    %c0_5 = arith.constant 0 : index
    %c0_6 = arith.constant 0 : index
    %6 = vector.load %arg2[%c0_5, %c0_6] : memref<32x128xf32, #tpu.memory_space<vmem>>, vector<32x128xf32>
    %c0_7 = arith.constant 0 : index
    %c0_8 = arith.constant 0 : index
    %7 = vector.load %arg4[%c0_7, %c0_8] : memref<32x128xf32, #tpu.memory_space<vmem>>, vector<32x128xf32>
    %c0_9 = arith.constant 0 : index
    %c0_10 = arith.constant 0 : index
    %8 = vector.load %arg5[%c0_9, %c0_10] : memref<32x128xf32, #tpu.memory_space<vmem>>, vector<32x128xf32>
    %c0_11 = arith.constant 0 : index
    %c0_12 = arith.constant 0 : index
    %9 = vector.load %arg6[%c0_11, %c0_12] : memref<1x128xf32, #tpu.memory_space<vmem>>, vector<1x128xf32>
    %c0_13 = arith.constant 0 : index
    %c0_14 = arith.constant 0 : index
    %10 = vector.load %arg7[%c0_13, %c0_14] : memref<32x128xf32, #tpu.memory_space<vmem>>, vector<32x128xf32>
    %c0_15 = arith.constant 0 : index
    %c0_16 = arith.constant 0 : index
    %11 = vector.load %arg8[%c0_15, %c0_16] : memref<32x128xf32, #tpu.memory_space<vmem>>, vector<32x128xf32>
    %c0_17 = arith.constant 0 : index
    %c0_18 = arith.constant 0 : index
    %12 = vector.load %arg9[%c0_17, %c0_18] : memref<1x128xf32, #tpu.memory_space<vmem>>, vector<1x128xf32>
    %cst_19 = arith.constant 0.000000e+00 : f32
    %13 = vector.broadcast %cst_19 : f32 to vector<1x32xf32>
    %cst_20 = arith.constant 0.000000e+00 : f32
    %14 = vector.broadcast %cst_20 : f32 to vector<1x32xf32>
    %cst_21 = arith.constant 0.000000e+00 : f32
    %15 = vector.broadcast %cst_21 : f32 to vector<1x32xf32>
    %cst_22 = arith.constant 0.000000e+00 : f32
    %16 = vector.broadcast %cst_22 : f32 to vector<1x32xf32>
    %cst_23 = arith.constant 0.000000e+00 : f32
    %17 = vector.broadcast %cst_23 : f32 to vector<1x32xf32>
    %cst_24 = arith.constant 0.000000e+00 : f32
    %18 = vector.broadcast %cst_24 : f32 to vector<1x32xf32>
    %19 = vector.extract_strided_slice %5 {offsets = [0, 0], sizes = [1, 128], strides = [1, 1]} : vector<4x128xf32> to vector<1x128xf32>
    %cst_25 = arith.constant dense<0.000000e+00> : vector<1x128xf32>
    %20 = tpu.matmul %13, %6, %cst_25 {dimension_numbers = #tpu.dot_dimension_numbers<[1], [0], [0], [1], [0, 0, 1, 1], [], []>} : vector<1x32xf32>, vector<32x128xf32>, vector<1x128xf32> -> vector<1x128xf32>
    %21 = arith.addf %19, %20 : vector<1x128xf32>
    %22 = vector.extract_strided_slice %21 {offsets = [0, 0], sizes = [1, 96], strides = [1, 1]} : vector<1x128xf32> to vector<1x96xf32>
    %23 = arith.negf %22 : vector<1x96xf32>
    %24 = math.exp %23 : vector<1x96xf32>
    %cst_26 = arith.constant 1.000000e+00 : f32
    %25 = vector.broadcast %cst_26 : f32 to vector<1x96xf32>
    %26 = arith.addf %25, %24 : vector<1x96xf32>
    %27 = arith.divf %25, %26 : vector<1x96xf32>
    %28 = vector.extract_strided_slice %21 {offsets = [0, 96], sizes = [1, 32], strides = [1, 1]} : vector<1x128xf32> to vector<1x32xf32>
    %29 = math.tanh %28 : vector<1x32xf32>
    %30 = vector.extract_strided_slice %27 {offsets = [0, 0], sizes = [1, 32], strides = [1, 1]} : vector<1x96xf32> to vector<1x32xf32>
    %31 = vector.extract_strided_slice %27 {offsets = [0, 32], sizes = [1, 32], strides = [1, 1]} : vector<1x96xf32> to vector<1x32xf32>
    %32 = vector.extract_strided_slice %27 {offsets = [0, 64], sizes = [1, 32], strides = [1, 1]} : vector<1x96xf32> to vector<1x32xf32>
    %33 = arith.mulf %31, %14 : vector<1x32xf32>
    %34 = arith.mulf %30, %29 : vector<1x32xf32>
    %35 = arith.addf %33, %34 : vector<1x32xf32>
    %36 = math.tanh %35 : vector<1x32xf32>
    %37 = arith.mulf %32, %36 : vector<1x32xf32>
    %cst_27 = arith.constant dense<0.000000e+00> : vector<1x128xf32>
    %38 = tpu.matmul %37, %7, %cst_27 {dimension_numbers = #tpu.dot_dimension_numbers<[1], [0], [0], [1], [0, 0, 1, 1], [], []>} : vector<1x32xf32>, vector<32x128xf32>, vector<1x128xf32> -> vector<1x128xf32>
    %cst_28 = arith.constant dense<0.000000e+00> : vector<1x128xf32>
    %39 = tpu.matmul %15, %8, %cst_28 {dimension_numbers = #tpu.dot_dimension_numbers<[1], [0], [0], [1], [0, 0, 1, 1], [], []>} : vector<1x32xf32>, vector<32x128xf32>, vector<1x128xf32> -> vector<1x128xf32>
    %40 = arith.addf %38, %39 : vector<1x128xf32>
    %41 = arith.addf %40, %9 : vector<1x128xf32>
    %42 = vector.extract_strided_slice %41 {offsets = [0, 0], sizes = [1, 96], strides = [1, 1]} : vector<1x128xf32> to vector<1x96xf32>
    %43 = arith.negf %42 : vector<1x96xf32>
    %44 = math.exp %43 : vector<1x96xf32>
    %cst_29 = arith.constant 1.000000e+00 : f32
    %45 = vector.broadcast %cst_29 : f32 to vector<1x96xf32>
    %46 = arith.addf %45, %44 : vector<1x96xf32>
    %47 = arith.divf %45, %46 : vector<1x96xf32>
    %48 = vector.extract_strided_slice %41 {offsets = [0, 96], sizes = [1, 32], strides = [1, 1]} : vector<1x128xf32> to vector<1x32xf32>
    %49 = math.tanh %48 : vector<1x32xf32>
    %50 = vector.extract_strided_slice %47 {offsets = [0, 0], sizes = [1, 32], strides = [1, 1]} : vector<1x96xf32> to vector<1x32xf32>
    %51 = vector.extract_strided_slice %47 {offsets = [0, 32], sizes = [1, 32], strides = [1, 1]} : vector<1x96xf32> to vector<1x32xf32>
    %52 = vector.extract_strided_slice %47 {offsets = [0, 64], sizes = [1, 32], strides = [1, 1]} : vector<1x96xf32> to vector<1x32xf32>
    %53 = arith.mulf %51, %16 : vector<1x32xf32>
    %54 = arith.mulf %50, %49 : vector<1x32xf32>
    %55 = arith.addf %53, %54 : vector<1x32xf32>
    %56 = math.tanh %55 : vector<1x32xf32>
    %57 = arith.mulf %52, %56 : vector<1x32xf32>
    %cst_30 = arith.constant dense<0.000000e+00> : vector<1x128xf32>
    %58 = tpu.matmul %57, %10, %cst_30 {dimension_numbers = #tpu.dot_dimension_numbers<[1], [0], [0], [1], [0, 0, 1, 1], [], []>} : vector<1x32xf32>, vector<32x128xf32>, vector<1x128xf32> -> vector<1x128xf32>
    %cst_31 = arith.constant dense<0.000000e+00> : vector<1x128xf32>
    %59 = tpu.matmul %17, %11, %cst_31 {dimension_numbers = #tpu.dot_dimension_numbers<[1], [0], [0], [1], [0, 0, 1, 1], [], []>} : vector<1x32xf32>, vector<32x128xf32>, vector<1x128xf32> -> vector<1x128xf32>
    %60 = arith.addf %58, %59 : vector<1x128xf32>
    %61 = arith.addf %60, %12 : vector<1x128xf32>
    %62 = vector.extract_strided_slice %61 {offsets = [0, 0], sizes = [1, 96], strides = [1, 1]} : vector<1x128xf32> to vector<1x96xf32>
    %63 = arith.negf %62 : vector<1x96xf32>
    %64 = math.exp %63 : vector<1x96xf32>
    %cst_32 = arith.constant 1.000000e+00 : f32
    %65 = vector.broadcast %cst_32 : f32 to vector<1x96xf32>
    %66 = arith.addf %65, %64 : vector<1x96xf32>
    %67 = arith.divf %65, %66 : vector<1x96xf32>
    %68 = vector.extract_strided_slice %61 {offsets = [0, 96], sizes = [1, 32], strides = [1, 1]} : vector<1x128xf32> to vector<1x32xf32>
    %69 = math.tanh %68 : vector<1x32xf32>
    %70 = vector.extract_strided_slice %67 {offsets = [0, 0], sizes = [1, 32], strides = [1, 1]} : vector<1x96xf32> to vector<1x32xf32>
    %71 = vector.extract_strided_slice %67 {offsets = [0, 32], sizes = [1, 32], strides = [1, 1]} : vector<1x96xf32> to vector<1x32xf32>
    %72 = vector.extract_strided_slice %67 {offsets = [0, 64], sizes = [1, 32], strides = [1, 1]} : vector<1x96xf32> to vector<1x32xf32>
    %73 = arith.mulf %71, %18 : vector<1x32xf32>
    %74 = arith.mulf %70, %69 : vector<1x32xf32>
    %75 = arith.addf %73, %74 : vector<1x32xf32>
    %76 = math.tanh %75 : vector<1x32xf32>
    %77 = arith.mulf %72, %76 : vector<1x32xf32>
    %c0_33 = arith.constant 0 : index
    %c0_34 = arith.constant 0 : index
    %78 = vector.load %arg13[%c0_33, %c0_34] : memref<4x32xf32, #tpu.memory_space<vmem>>, vector<1x32xf32>
    tpu.vector_store %arg13[%c0_33, %c0_34], %77 {strides = array<i32>} : memref<4x32xf32, #tpu.memory_space<vmem>>, vector<1x32xf32>,
    %79 = vector.extract_strided_slice %5 {offsets = [1, 0], sizes = [1, 128], strides = [1, 1]} : vector<4x128xf32> to vector<1x128xf32>
    %cst_35 = arith.constant dense<0.000000e+00> : vector<1x128xf32>
    %80 = tpu.matmul %37, %6, %cst_35 {dimension_numbers = #tpu.dot_dimension_numbers<[1], [0], [0], [1], [0, 0, 1, 1], [], []>} : vector<1x32xf32>, vector<32x128xf32>, vector<1x128xf32> -> vector<1x128xf32>
    %81 = arith.addf %79, %80 : vector<1x128xf32>
    %82 = vector.extract_strided_slice %81 {offsets = [0, 0], sizes = [1, 96], strides = [1, 1]} : vector<1x128xf32> to vector<1x96xf32>
    %83 = arith.negf %82 : vector<1x96xf32>
    %84 = math.exp %83 : vector<1x96xf32>
    %cst_36 = arith.constant 1.000000e+00 : f32
    %85 = vector.broadcast %cst_36 : f32 to vector<1x96xf32>
    %86 = arith.addf %85, %84 : vector<1x96xf32>
    %87 = arith.divf %85, %86 : vector<1x96xf32>
    %88 = vector.extract_strided_slice %81 {offsets = [0, 96], sizes = [1, 32], strides = [1, 1]} : vector<1x128xf32> to vector<1x32xf32>
    %89 = math.tanh %88 : vector<1x32xf32>
    %90 = vector.extract_strided_slice %87 {offsets = [0, 0], sizes = [1, 32], strides = [1, 1]} : vector<1x96xf32> to vector<1x32xf32>
    %91 = vector.extract_strided_slice %87 {offsets = [0, 32], sizes = [1, 32], strides = [1, 1]} : vector<1x96xf32> to vector<1x32xf32>
    %92 = vector.extract_strided_slice %87 {offsets = [0, 64], sizes = [1, 32], strides = [1, 1]} : vector<1x96xf32> to vector<1x32xf32>
    %93 = arith.mulf %91, %35 : vector<1x32xf32>
    %94 = arith.mulf %90, %89 : vector<1x32xf32>
    %95 = arith.addf %93, %94 : vector<1x32xf32>
    %96 = math.tanh %95 : vector<1x32xf32>
    %97 = arith.mulf %92, %96 : vector<1x32xf32>
    %cst_37 = arith.constant dense<0.000000e+00> : vector<1x128xf32>
    %98 = tpu.matmul %97, %7, %cst_37 {dimension_numbers = #tpu.dot_dimension_numbers<[1], [0], [0], [1], [0, 0, 1, 1], [], []>} : vector<1x32xf32>, vector<32x128xf32>, vector<1x128xf32> -> vector<1x128xf32>
    %cst_38 = arith.constant dense<0.000000e+00> : vector<1x128xf32>
    %99 = tpu.matmul %57, %8, %cst_38 {dimension_numbers = #tpu.dot_dimension_numbers<[1], [0], [0], [1], [0, 0, 1, 1], [], []>} : vector<1x32xf32>, vector<32x128xf32>, vector<1x128xf32> -> vector<1x128xf32>
    %100 = arith.addf %98, %99 : vector<1x128xf32>
    %101 = arith.addf %100, %9 : vector<1x128xf32>
    %102 = vector.extract_strided_slice %101 {offsets = [0, 0], sizes = [1, 96], strides = [1, 1]} : vector<1x128xf32> to vector<1x96xf32>
    %103 = arith.negf %102 : vector<1x96xf32>
    %104 = math.exp %103 : vector<1x96xf32>
    %cst_39 = arith.constant 1.000000e+00 : f32
    %105 = vector.broadcast %cst_39 : f32 to vector<1x96xf32>
    %106 = arith.addf %105, %104 : vector<1x96xf32>
    %107 = arith.divf %105, %106 : vector<1x96xf32>
    %108 = vector.extract_strided_slice %101 {offsets = [0, 96], sizes = [1, 32], strides = [1, 1]} : vector<1x128xf32> to vector<1x32xf32>
    %109 = math.tanh %108 : vector<1x32xf32>
    %110 = vector.extract_strided_slice %107 {offsets = [0, 0], sizes = [1, 32], strides = [1, 1]} : vector<1x96xf32> to vector<1x32xf32>
    %111 = vector.extract_strided_slice %107 {offsets = [0, 32], sizes = [1, 32], strides = [1, 1]} : vector<1x96xf32> to vector<1x32xf32>
    %112 = vector.extract_strided_slice %107 {offsets = [0, 64], sizes = [1, 32], strides = [1, 1]} : vector<1x96xf32> to vector<1x32xf32>
    %113 = arith.mulf %111, %55 : vector<1x32xf32>
    %114 = arith.mulf %110, %109 : vector<1x32xf32>
    %115 = arith.addf %113, %114 : vector<1x32xf32>
    %116 = math.tanh %115 : vector<1x32xf32>
    %117 = arith.mulf %112, %116 : vector<1x32xf32>
    %cst_40 = arith.constant dense<0.000000e+00> : vector<1x128xf32>
    %118 = tpu.matmul %117, %10, %cst_40 {dimension_numbers = #tpu.dot_dimension_numbers<[1], [0], [0], [1], [0, 0, 1, 1], [], []>} : vector<1x32xf32>, vector<32x128xf32>, vector<1x128xf32> -> vector<1x128xf32>
    %cst_41 = arith.constant dense<0.000000e+00> : vector<1x128xf32>
    %119 = tpu.matmul %77, %11, %cst_41 {dimension_numbers = #tpu.dot_dimension_numbers<[1], [0], [0], [1], [0, 0, 1, 1], [], []>} : vector<1x32xf32>, vector<32x128xf32>, vector<1x128xf32> -> vector<1x128xf32>
    %120 = arith.addf %118, %119 : vector<1x128xf32>
    %121 = arith.addf %120, %12 : vector<1x128xf32>
    %122 = vector.extract_strided_slice %121 {offsets = [0, 0], sizes = [1, 96], strides = [1, 1]} : vector<1x128xf32> to vector<1x96xf32>
    %123 = arith.negf %122 : vector<1x96xf32>
    %124 = math.exp %123 : vector<1x96xf32>
    %cst_42 = arith.constant 1.000000e+00 : f32
    %125 = vector.broadcast %cst_42 : f32 to vector<1x96xf32>
    %126 = arith.addf %125, %124 : vector<1x96xf32>
    %127 = arith.divf %125, %126 : vector<1x96xf32>
    %128 = vector.extract_strided_slice %121 {offsets = [0, 96], sizes = [1, 32], strides = [1, 1]} : vector<1x128xf32> to vector<1x32xf32>
    %129 = math.tanh %128 : vector<1x32xf32>
    %130 = vector.extract_strided_slice %127 {offsets = [0, 0], sizes = [1, 32], strides = [1, 1]} : vector<1x96xf32> to vector<1x32xf32>
    %131 = vector.extract_strided_slice %127 {offsets = [0, 32], sizes = [1, 32], strides = [1, 1]} : vector<1x96xf32> to vector<1x32xf32>
    %132 = vector.extract_strided_slice %127 {offsets = [0, 64], sizes = [1, 32], strides = [1, 1]} : vector<1x96xf32> to vector<1x32xf32>
    %133 = arith.mulf %131, %75 : vector<1x32xf32>
    %134 = arith.mulf %130, %129 : vector<1x32xf32>
    %135 = arith.addf %133, %134 : vector<1x32xf32>
    %136 = math.tanh %135 : vector<1x32xf32>
    %137 = arith.mulf %132, %136 : vector<1x32xf32>
    %c1 = arith.constant 1 : index
    %c0_43 = arith.constant 0 : index
    %138 = vector.load %arg13[%c1, %c0_43] : memref<4x32xf32, #tpu.memory_space<vmem>>, vector<1x32xf32>
    tpu.vector_store %arg13[%c1, %c0_43], %137 {strides = array<i32>} : memref<4x32xf32, #tpu.memory_space<vmem>>, vector<1x32xf32>,
    %139 = vector.extract_strided_slice %5 {offsets = [2, 0], sizes = [1, 128], strides = [1, 1]} : vector<4x128xf32> to vector<1x128xf32>
    %cst_44 = arith.constant dense<0.000000e+00> : vector<1x128xf32>
    %140 = tpu.matmul %97, %6, %cst_44 {dimension_numbers = #tpu.dot_dimension_numbers<[1], [0], [0], [1], [0, 0, 1, 1], [], []>} : vector<1x32xf32>, vector<32x128xf32>, vector<1x128xf32> -> vector<1x128xf32>
    %141 = arith.addf %139, %140 : vector<1x128xf32>
    %142 = vector.extract_strided_slice %141 {offsets = [0, 0], sizes = [1, 96], strides = [1, 1]} : vector<1x128xf32> to vector<1x96xf32>
    %143 = arith.negf %142 : vector<1x96xf32>
    %144 = math.exp %143 : vector<1x96xf32>
    %cst_45 = arith.constant 1.000000e+00 : f32
    %145 = vector.broadcast %cst_45 : f32 to vector<1x96xf32>
    %146 = arith.addf %145, %144 : vector<1x96xf32>
    %147 = arith.divf %145, %146 : vector<1x96xf32>
    %148 = vector.extract_strided_slice %141 {offsets = [0, 96], sizes = [1, 32], strides = [1, 1]} : vector<1x128xf32> to vector<1x32xf32>
    %149 = math.tanh %148 : vector<1x32xf32>
    %150 = vector.extract_strided_slice %147 {offsets = [0, 0], sizes = [1, 32], strides = [1, 1]} : vector<1x96xf32> to vector<1x32xf32>
    %151 = vector.extract_strided_slice %147 {offsets = [0, 32], sizes = [1, 32], strides = [1, 1]} : vector<1x96xf32> to vector<1x32xf32>
    %152 = vector.extract_strided_slice %147 {offsets = [0, 64], sizes = [1, 32], strides = [1, 1]} : vector<1x96xf32> to vector<1x32xf32>
    %153 = arith.mulf %151, %95 : vector<1x32xf32>
    %154 = arith.mulf %150, %149 : vector<1x32xf32>
    %155 = arith.addf %153, %154 : vector<1x32xf32>
    %156 = math.tanh %155 : vector<1x32xf32>
    %157 = arith.mulf %152, %156 : vector<1x32xf32>
    %cst_46 = arith.constant dense<0.000000e+00> : vector<1x128xf32>
    %158 = tpu.matmul %157, %7, %cst_46 {dimension_numbers = #tpu.dot_dimension_numbers<[1], [0], [0], [1], [0, 0, 1, 1], [], []>} : vector<1x32xf32>, vector<32x128xf32>, vector<1x128xf32> -> vector<1x128xf32>
    %cst_47 = arith.constant dense<0.000000e+00> : vector<1x128xf32>
    %159 = tpu.matmul %117, %8, %cst_47 {dimension_numbers = #tpu.dot_dimension_numbers<[1], [0], [0], [1], [0, 0, 1, 1], [], []>} : vector<1x32xf32>, vector<32x128xf32>, vector<1x128xf32> -> vector<1x128xf32>
    %160 = arith.addf %158, %159 : vector<1x128xf32>
    %161 = arith.addf %160, %9 : vector<1x128xf32>
    %162 = vector.extract_strided_slice %161 {offsets = [0, 0], sizes = [1, 96], strides = [1, 1]} : vector<1x128xf32> to vector<1x96xf32>
    %163 = arith.negf %162 : vector<1x96xf32>
    %164 = math.exp %163 : vector<1x96xf32>
    %cst_48 = arith.constant 1.000000e+00 : f32
    %165 = vector.broadcast %cst_48 : f32 to vector<1x96xf32>
    %166 = arith.addf %165, %164 : vector<1x96xf32>
    %167 = arith.divf %165, %166 : vector<1x96xf32>
    %168 = vector.extract_strided_slice %161 {offsets = [0, 96], sizes = [1, 32], strides = [1, 1]} : vector<1x128xf32> to vector<1x32xf32>
    %169 = math.tanh %168 : vector<1x32xf32>
    %170 = vector.extract_strided_slice %167 {offsets = [0, 0], sizes = [1, 32], strides = [1, 1]} : vector<1x96xf32> to vector<1x32xf32>
    %171 = vector.extract_strided_slice %167 {offsets = [0, 32], sizes = [1, 32], strides = [1, 1]} : vector<1x96xf32> to vector<1x32xf32>
    %172 = vector.extract_strided_slice %167 {offsets = [0, 64], sizes = [1, 32], strides = [1, 1]} : vector<1x96xf32> to vector<1x32xf32>
    %173 = arith.mulf %171, %115 : vector<1x32xf32>
    %174 = arith.mulf %170, %169 : vector<1x32xf32>
    %175 = arith.addf %173, %174 : vector<1x32xf32>
    %176 = math.tanh %175 : vector<1x32xf32>
    %177 = arith.mulf %172, %176 : vector<1x32xf32>
    %cst_49 = arith.constant dense<0.000000e+00> : vector<1x128xf32>
    %178 = tpu.matmul %177, %10, %cst_49 {dimension_numbers = #tpu.dot_dimension_numbers<[1], [0], [0], [1], [0, 0, 1, 1], [], []>} : vector<1x32xf32>, vector<32x128xf32>, vector<1x128xf32> -> vector<1x128xf32>
    %cst_50 = arith.constant dense<0.000000e+00> : vector<1x128xf32>
    %179 = tpu.matmul %137, %11, %cst_50 {dimension_numbers = #tpu.dot_dimension_numbers<[1], [0], [0], [1], [0, 0, 1, 1], [], []>} : vector<1x32xf32>, vector<32x128xf32>, vector<1x128xf32> -> vector<1x128xf32>
    %180 = arith.addf %178, %179 : vector<1x128xf32>
    %181 = arith.addf %180, %12 : vector<1x128xf32>
    %182 = vector.extract_strided_slice %181 {offsets = [0, 0], sizes = [1, 96], strides = [1, 1]} : vector<1x128xf32> to vector<1x96xf32>
    %183 = arith.negf %182 : vector<1x96xf32>
    %184 = math.exp %183 : vector<1x96xf32>
    %cst_51 = arith.constant 1.000000e+00 : f32
    %185 = vector.broadcast %cst_51 : f32 to vector<1x96xf32>
    %186 = arith.addf %185, %184 : vector<1x96xf32>
    %187 = arith.divf %185, %186 : vector<1x96xf32>
    %188 = vector.extract_strided_slice %181 {offsets = [0, 96], sizes = [1, 32], strides = [1, 1]} : vector<1x128xf32> to vector<1x32xf32>
    %189 = math.tanh %188 : vector<1x32xf32>
    %190 = vector.extract_strided_slice %187 {offsets = [0, 0], sizes = [1, 32], strides = [1, 1]} : vector<1x96xf32> to vector<1x32xf32>
    %191 = vector.extract_strided_slice %187 {offsets = [0, 32], sizes = [1, 32], strides = [1, 1]} : vector<1x96xf32> to vector<1x32xf32>
    %192 = vector.extract_strided_slice %187 {offsets = [0, 64], sizes = [1, 32], strides = [1, 1]} : vector<1x96xf32> to vector<1x32xf32>
    %193 = arith.mulf %191, %135 : vector<1x32xf32>
    %194 = arith.mulf %190, %189 : vector<1x32xf32>
    %195 = arith.addf %193, %194 : vector<1x32xf32>
    %196 = math.tanh %195 : vector<1x32xf32>
    %197 = arith.mulf %192, %196 : vector<1x32xf32>
    %c2 = arith.constant 2 : index
    %c0_52 = arith.constant 0 : index
    %198 = vector.load %arg13[%c2, %c0_52] : memref<4x32xf32, #tpu.memory_space<vmem>>, vector<1x32xf32>
    tpu.vector_store %arg13[%c2, %c0_52], %197 {strides = array<i32>} : memref<4x32xf32, #tpu.memory_space<vmem>>, vector<1x32xf32>,
    %199 = vector.extract_strided_slice %5 {offsets = [3, 0], sizes = [1, 128], strides = [1, 1]} : vector<4x128xf32> to vector<1x128xf32>
    %cst_53 = arith.constant dense<0.000000e+00> : vector<1x128xf32>
    %200 = tpu.matmul %157, %6, %cst_53 {dimension_numbers = #tpu.dot_dimension_numbers<[1], [0], [0], [1], [0, 0, 1, 1], [], []>} : vector<1x32xf32>, vector<32x128xf32>, vector<1x128xf32> -> vector<1x128xf32>
    %201 = arith.addf %199, %200 : vector<1x128xf32>
    %202 = vector.extract_strided_slice %201 {offsets = [0, 0], sizes = [1, 96], strides = [1, 1]} : vector<1x128xf32> to vector<1x96xf32>
    %203 = arith.negf %202 : vector<1x96xf32>
    %204 = math.exp %203 : vector<1x96xf32>
    %cst_54 = arith.constant 1.000000e+00 : f32
    %205 = vector.broadcast %cst_54 : f32 to vector<1x96xf32>
    %206 = arith.addf %205, %204 : vector<1x96xf32>
    %207 = arith.divf %205, %206 : vector<1x96xf32>
    %208 = vector.extract_strided_slice %201 {offsets = [0, 96], sizes = [1, 32], strides = [1, 1]} : vector<1x128xf32> to vector<1x32xf32>
    %209 = math.tanh %208 : vector<1x32xf32>
    %210 = vector.extract_strided_slice %207 {offsets = [0, 0], sizes = [1, 32], strides = [1, 1]} : vector<1x96xf32> to vector<1x32xf32>
    %211 = vector.extract_strided_slice %207 {offsets = [0, 32], sizes = [1, 32], strides = [1, 1]} : vector<1x96xf32> to vector<1x32xf32>
    %212 = vector.extract_strided_slice %207 {offsets = [0, 64], sizes = [1, 32], strides = [1, 1]} : vector<1x96xf32> to vector<1x32xf32>
    %213 = arith.mulf %211, %155 : vector<1x32xf32>
    %214 = arith.mulf %210, %209 : vector<1x32xf32>
    %215 = arith.addf %213, %214 : vector<1x32xf32>
    %216 = math.tanh %215 : vector<1x32xf32>
    %217 = arith.mulf %212, %216 : vector<1x32xf32>
    %cst_55 = arith.constant dense<0.000000e+00> : vector<1x128xf32>
    %218 = tpu.matmul %217, %7, %cst_55 {dimension_numbers = #tpu.dot_dimension_numbers<[1], [0], [0], [1], [0, 0, 1, 1], [], []>} : vector<1x32xf32>, vector<32x128xf32>, vector<1x128xf32> -> vector<1x128xf32>
    %cst_56 = arith.constant dense<0.000000e+00> : vector<1x128xf32>
    %219 = tpu.matmul %177, %8, %cst_56 {dimension_numbers = #tpu.dot_dimension_numbers<[1], [0], [0], [1], [0, 0, 1, 1], [], []>} : vector<1x32xf32>, vector<32x128xf32>, vector<1x128xf32> -> vector<1x128xf32>
    %220 = arith.addf %218, %219 : vector<1x128xf32>
    %221 = arith.addf %220, %9 : vector<1x128xf32>
    %222 = vector.extract_strided_slice %221 {offsets = [0, 0], sizes = [1, 96], strides = [1, 1]} : vector<1x128xf32> to vector<1x96xf32>
    %223 = arith.negf %222 : vector<1x96xf32>
    %224 = math.exp %223 : vector<1x96xf32>
    %cst_57 = arith.constant 1.000000e+00 : f32
    %225 = vector.broadcast %cst_57 : f32 to vector<1x96xf32>
    %226 = arith.addf %225, %224 : vector<1x96xf32>
    %227 = arith.divf %225, %226 : vector<1x96xf32>
    %228 = vector.extract_strided_slice %221 {offsets = [0, 96], sizes = [1, 32], strides = [1, 1]} : vector<1x128xf32> to vector<1x32xf32>
    %229 = math.tanh %228 : vector<1x32xf32>
    %230 = vector.extract_strided_slice %227 {offsets = [0, 0], sizes = [1, 32], strides = [1, 1]} : vector<1x96xf32> to vector<1x32xf32>
    %231 = vector.extract_strided_slice %227 {offsets = [0, 32], sizes = [1, 32], strides = [1, 1]} : vector<1x96xf32> to vector<1x32xf32>
    %232 = vector.extract_strided_slice %227 {offsets = [0, 64], sizes = [1, 32], strides = [1, 1]} : vector<1x96xf32> to vector<1x32xf32>
    %233 = arith.mulf %231, %175 : vector<1x32xf32>
    %234 = arith.mulf %230, %229 : vector<1x32xf32>
    %235 = arith.addf %233, %234 : vector<1x32xf32>
    %236 = math.tanh %235 : vector<1x32xf32>
    %237 = arith.mulf %232, %236 : vector<1x32xf32>
    %cst_58 = arith.constant dense<0.000000e+00> : vector<1x128xf32>
    %238 = tpu.matmul %237, %10, %cst_58 {dimension_numbers = #tpu.dot_dimension_numbers<[1], [0], [0], [1], [0, 0, 1, 1], [], []>} : vector<1x32xf32>, vector<32x128xf32>, vector<1x128xf32> -> vector<1x128xf32>
    %cst_59 = arith.constant dense<0.000000e+00> : vector<1x128xf32>
    %239 = tpu.matmul %197, %11, %cst_59 {dimension_numbers = #tpu.dot_dimension_numbers<[1], [0], [0], [1], [0, 0, 1, 1], [], []>} : vector<1x32xf32>, vector<32x128xf32>, vector<1x128xf32> -> vector<1x128xf32>
    %240 = arith.addf %238, %239 : vector<1x128xf32>
    %241 = arith.addf %240, %12 : vector<1x128xf32>
    %242 = vector.extract_strided_slice %241 {offsets = [0, 0], sizes = [1, 96], strides = [1, 1]} : vector<1x128xf32> to vector<1x96xf32>
    %243 = arith.negf %242 : vector<1x96xf32>
    %244 = math.exp %243 : vector<1x96xf32>
    %cst_60 = arith.constant 1.000000e+00 : f32
    %245 = vector.broadcast %cst_60 : f32 to vector<1x96xf32>
    %246 = arith.addf %245, %244 : vector<1x96xf32>
    %247 = arith.divf %245, %246 : vector<1x96xf32>
    %248 = vector.extract_strided_slice %241 {offsets = [0, 96], sizes = [1, 32], strides = [1, 1]} : vector<1x128xf32> to vector<1x32xf32>
    %249 = math.tanh %248 : vector<1x32xf32>
    %250 = vector.extract_strided_slice %247 {offsets = [0, 0], sizes = [1, 32], strides = [1, 1]} : vector<1x96xf32> to vector<1x32xf32>
    %251 = vector.extract_strided_slice %247 {offsets = [0, 32], sizes = [1, 32], strides = [1, 1]} : vector<1x96xf32> to vector<1x32xf32>
    %252 = vector.extract_strided_slice %247 {offsets = [0, 64], sizes = [1, 32], strides = [1, 1]} : vector<1x96xf32> to vector<1x32xf32>
    %253 = arith.mulf %251, %195 : vector<1x32xf32>
    %254 = arith.mulf %250, %249 : vector<1x32xf32>
    %255 = arith.addf %253, %254 : vector<1x32xf32>
    %256 = math.tanh %255 : vector<1x32xf32>
    %257 = arith.mulf %252, %256 : vector<1x32xf32>
    %c3 = arith.constant 3 : index
    %c0_61 = arith.constant 0 : index
    %258 = vector.load %arg13[%c3, %c0_61] : memref<4x32xf32, #tpu.memory_space<vmem>>, vector<1x32xf32>
    tpu.vector_store %arg13[%c3, %c0_61], %257 {strides = array<i32>} : memref<4x32xf32, #tpu.memory_space<vmem>>, vector<1x32xf32>,
    %c0_62 = arith.constant 0 : index
    %c0_63 = arith.constant 0 : index
    %259 = vector.load %arg13[%c0_62, %c0_63] : memref<4x32xf32, #tpu.memory_space<vmem>>, vector<4x32xf32>
    %c0_64 = arith.constant 0 : index
    %c0_65 = arith.constant 0 : index
    %260 = vector.load %arg10[%c0_64, %c0_65] : memref<32x8xf32, #tpu.memory_space<vmem>>, vector<32x8xf32>
    %cst_66 = arith.constant dense<0.000000e+00> : vector<4x8xf32>
    %261 = tpu.matmul %259, %260, %cst_66 {dimension_numbers = #tpu.dot_dimension_numbers<[1], [0], [0], [1], [0, 0, 1, 1], [], []>} : vector<4x32xf32>, vector<32x8xf32>, vector<4x8xf32> -> vector<4x8xf32>
    %c0_67 = arith.constant 0 : index
    %c0_68 = arith.constant 0 : index
    %262 = vector.load %arg11[%c0_67, %c0_68] : memref<1x8xf32, #tpu.memory_space<vmem>>, vector<1x8xf32>
    %263 = vector.broadcast %262 : vector<1x8xf32> to vector<4x8xf32>
    %264 = arith.addf %261, %263 : vector<4x8xf32>
    %c0_69 = arith.constant 0 : index
    %c0_70 = arith.constant 0 : index
    %265 = vector.load %arg12[%c0_69, %c0_70] : memref<4x8xf32, #tpu.memory_space<vmem>>, vector<4x8xf32>
    tpu.vector_store %arg12[%c0_69, %c0_70], %264 {strides = array<i32>} : memref<4x8xf32, #tpu.memory_space<vmem>>, vector<4x8xf32>,
    return
  }
}

</mosaic_0001>

<llo_original>
// kernel: tpu_custom_call.1
$region0: #{tpu_custom_call.1}
  #allocation0 [shape = 'u32[]', space=smem, size = 0x4, offset = 0x4, fixed_abs, tag = 'smem constant byte address 0x4 - core index']
  #allocation1 [shape = 'u32[144,128]{1,0:T(1,128)}', space=vmem, size = 0x12000, scoped, tag = 'internal scratch']
  #allocation2 [shape = 'f32[4,32]{1,0:T(4,128)}', space=vmem, size = 0x800, scoped, tag = 'scratch operand']
  %s0 = inlined_call_operand.hbm [shape: f32[4,32], index: 0, kind: input, shape index: {}]
  %s1 = inlined_call_operand.vmem [shape: f32[32,128], index: 1, kind: input, shape index: {}]
  %s2 = inlined_call_operand.hbm [shape: f32[32,128], index: 2, kind: input, shape index: {}]
  %s3 = inlined_call_operand.vmem [shape: f32[1,128], index: 3, kind: input, shape index: {}]
  %s4 = inlined_call_operand.hbm [shape: f32[32,128], index: 4, kind: input, shape index: {}]
  %s5 = inlined_call_operand.hbm [shape: f32[32,128], index: 5, kind: input, shape index: {}]
  %s6 = inlined_call_operand.vmem [shape: f32[1,128], index: 6, kind: input, shape index: {}]
  %s7 = inlined_call_operand.vmem [shape: f32[32,128], index: 7, kind: input, shape index: {}]
  %s8 = inlined_call_operand.hbm [shape: f32[32,128], index: 8, kind: input, shape index: {}]
  %s9 = inlined_call_operand.hbm [shape: f32[1,128], index: 9, kind: input, shape index: {}]
  %s10 = inlined_call_operand.vmem [shape: f32[32,8], index: 10, kind: input, shape index: {}]
  %s11 = inlined_call_operand.vmem [shape: f32[1,8], index: 11, kind: input, shape index: {}]
  %s12 = inlined_call_operand.hbm [shape: f32[4,8], index: 12, kind: output, shape index: {}]
  %s13 = sld [smem:[#allocation0]]
  $region82: #{tpu_custom_call.1} parent=0
    _
  %s15 = ssub.s32 1, %s13
  %s16 = scalar_select 0, %s15, %s13
  $region1: #{tpu_custom_call.1} parent=0
    #allocation3 [shape = 'u8[2048]{0}', space=vmem, size = 0x800, scoped, tag = 'input window, operand 0, single buffered']
    #allocation4 [shape = 's32[1]{0}', space=sflag, size = 0x4, scoped, tag = 'scoped memory for tpu_custom_call.1']
    #allocation5 [shape = 's32[1]{0}', space=sflag, size = 0x4, scoped, tag = 'scoped memory for tpu_custom_call.1']
    #allocation6 [shape = 'u8[16384]{0}', space=vmem, size = 0x4000, scoped, tag = 'input window, operand 2, single buffered']
    #allocation7 [shape = 's32[1]{0}', space=sflag, size = 0x4, scoped, tag = 'scoped memory for tpu_custom_call.1']
    #allocation8 [shape = 'u8[16384]{0}', space=vmem, size = 0x4000, scoped, tag = 'input window, operand 4, single buffered']
    #allocation9 [shape = 'u8[16384]{0}', space=vmem, size = 0x4000, scoped, tag = 'input window, operand 5, single buffered']
    #allocation10 [shape = 's32[1]{0}', space=sflag, size = 0x4, scoped, tag = 'scoped memory for tpu_custom_call.1']
    #allocation11 [shape = 'u8[16384]{0}', space=vmem, size = 0x4000, scoped, tag = 'input window, operand 8, single buffered']
    #allocation12 [shape = 'u8[512]{0}', space=vmem, size = 0x400, scoped, tag = 'input window, operand 9, single buffered']
    #allocation13 [shape = 's32[1]{0}', space=sflag, size = 0x4, scoped, tag = 'scoped memory for tpu_custom_call.1']
    #allocation14 [shape = 'u8[2048]{0}', space=vmem, size = 0x800, scoped, tag = 'output window, operand 0, single buffered']
    %17 = vsyncpa [#allocation4], 0
    %18 = vsyncpa [#allocation7], 0
    %19 = vsyncpa [#allocation10], 0
    %20 = vsyncpa [#allocation13], 0
    %21 = vsyncpa [#allocation5], 0
    // Predicated region
    $region2: #{tpu_custom_call.1} parent=1 // pred_check
      _
    $region3: #{tpu_custom_call.1} parent=1 // pred_check_branch
      %23 = sbr.rel (0) target = $region5
    $region4: #{tpu_custom_call.1} parent=1 // pred_region
      %s25 = ssub.s32 64, 64
      %26 = vsyncadd [#allocation4], %s25
      %s28 = sshll.u32 [#allocation3], 4
      %s29 = int_to_ptr.vmem [resolvable:$true] %s28
      %31 = dma.hbm_to_vmem [thread:$0]  %s0, 64, %s29, [#allocation4]
    $region5: #{tpu_custom_call.1} parent=1 // pred_fallthru
      _
    // Predicated region
    $region6: #{tpu_custom_call.1} parent=1 // pred_check
      _
    $region7: #{tpu_custom_call.1} parent=1 // pred_check_branch
      %33 = sbr.rel (0) target = $region9
    $region8: #{tpu_custom_call.1} parent=1 // pred_region
      _
    $region9: #{tpu_custom_call.1} parent=1 // pred_fallthru
      _
    // Predicated region
    $region10: #{tpu_custom_call.1} parent=1 // pred_check
      _
    $region11: #{tpu_custom_call.1} parent=1 // pred_check_branch
      %35 = sbr.rel (0) target = $region13
    $region12: #{tpu_custom_call.1} parent=1 // pred_region
      %s37 = ssub.s32 512, 512
      %38 = vsyncadd [#allocation7], %s37
      %s39 = sshll.u32 [#allocation6], 4
      %s40 = int_to_ptr.vmem [resolvable:$true] %s39
      %45 = dma.hbm_to_vmem [thread:$0]  %s2, 512, %s40, [#allocation7], 128, 128, 8
    $region13: #{tpu_custom_call.1} parent=1 // pred_fallthru
      _
    // Predicated region
    $region14: #{tpu_custom_call.1} parent=1 // pred_check
      _
    $region15: #{tpu_custom_call.1} parent=1 // pred_check_branch
      %47 = sbr.rel (0) target = $region17
    $region16: #{tpu_custom_call.1} parent=1 // pred_region
      _
    $region17: #{tpu_custom_call.1} parent=1 // pred_fallthru
      _
    // Predicated region
    $region18: #{tpu_custom_call.1} parent=1 // pred_check
      _
    $region19: #{tpu_custom_call.1} parent=1 // pred_check_branch
      %49 = sbr.rel (0) target = $region21
    $region20: #{tpu_custom_call.1} parent=1 // pred_region
      %s51 = ssub.s32 512, 512
      %52 = vsyncadd [#allocation7], %s51
      %s53 = sshll.u32 [#allocation8], 4
      %s54 = int_to_ptr.vmem [resolvable:$true] %s53
      %59 = dma.hbm_to_vmem [thread:$0]  %s4, 512, %s54, [#allocation7], 128, 128, 8
    $region21: #{tpu_custom_call.1} parent=1 // pred_fallthru
      _
    // Predicated region
    $region22: #{tpu_custom_call.1} parent=1 // pred_check
      _
    $region23: #{tpu_custom_call.1} parent=1 // pred_check_branch
      %61 = sbr.rel (0) target = $region25
    $region24: #{tpu_custom_call.1} parent=1 // pred_region
      %s63 = ssub.s32 512, 512
      %64 = vsyncadd [#allocation10], %s63
      %s65 = sshll.u32 [#allocation9], 4
      %s66 = int_to_ptr.vmem [resolvable:$true] %s65
      %71 = dma.hbm_to_vmem [thread:$0]  %s5, 512, %s66, [#allocation10], 128, 128, 8
    $region25: #{tpu_custom_call.1} parent=1 // pred_fallthru
      _
    // Predicated region
    $region26: #{tpu_custom_call.1} parent=1 // pred_check
      _
    $region27: #{tpu_custom_call.1} parent=1 // pred_check_branch
      %73 = sbr.rel (0) target = $region29
    $region28: #{tpu_custom_call.1} parent=1 // pred_region
      _
    $region29: #{tpu_custom_call.1} parent=1 // pred_fallthru
      _
    // Predicated region
    $region30: #{tpu_custom_call.1} parent=1 // pred_check
      _
    $region31: #{tpu_custom_call.1} parent=1 // pred_check_branch
      %75 = sbr.rel (0) target = $region33
    $region32: #{tpu_custom_call.1} parent=1 // pred_region
      _
    $region33: #{tpu_custom_call.1} parent=1 // pred_fallthru
      _
    // Predicated region
    $region34: #{tpu_custom_call.1} parent=1 // pred_check
      _
    $region35: #{tpu_custom_call.1} parent=1 // pred_check_branch
      %77 = sbr.rel (0) target = $region37
    $region36: #{tpu_custom_call.1} parent=1 // pred_region
      %s79 = ssub.s32 512, 512
      %80 = vsyncadd [#allocation10], %s79
      %s81 = sshll.u32 [#allocation11], 4
      %s82 = int_to_ptr.vmem [resolvable:$true] %s81
      %87 = dma.hbm_to_vmem [thread:$0]  %s8, 512, %s82, [#allocation10], 128, 128, 8
    $region37: #{tpu_custom_call.1} parent=1 // pred_fallthru
      _
    // Predicated region
    $region38: #{tpu_custom_call.1} parent=1 // pred_check
      _
    $region39: #{tpu_custom_call.1} parent=1 // pred_check_branch
      %89 = sbr.rel (0) target = $region41
    $region40: #{tpu_custom_call.1} parent=1 // pred_region
      %s91 = ssub.s32 16, 16
      %92 = vsyncadd [#allocation13], %s91
      %s94 = sshll.u32 [#allocation12], 4
      %s95 = int_to_ptr.vmem [resolvable:$true] %s94
      %97 = dma.hbm_to_vmem [thread:$0]  %s9, 16, %s95, [#allocation13]
    $region41: #{tpu_custom_call.1} parent=1 // pred_fallthru
      _
    // Predicated region
    $region42: #{tpu_custom_call.1} parent=1 // pred_check
      _
    $region43: #{tpu_custom_call.1} parent=1 // pred_check_branch
      %99 = sbr.rel (0) target = $region45
    $region44: #{tpu_custom_call.1} parent=1 // pred_region
      _
    $region45: #{tpu_custom_call.1} parent=1 // pred_fallthru
      _
    // Predicated region
    $region46: #{tpu_custom_call.1} parent=1 // pred_check
      _
    $region47: #{tpu_custom_call.1} parent=1 // pred_check_branch
      %101 = sbr.rel (0) target = $region49
    $region48: #{tpu_custom_call.1} parent=1 // pred_region
      _
    $region49: #{tpu_custom_call.1} parent=1 // pred_fallthru
      _
    // Predicated region
    $region50: #{tpu_custom_call.1} parent=1 // pred_check
      _
    $region51: #{tpu_custom_call.1} parent=1 // pred_check_branch
      %103 = sbr.rel (0) target = $region53
    $region52: #{tpu_custom_call.1} parent=1 // pred_region
      %104 = dma.done [#allocation4], 64
    $region53: #{tpu_custom_call.1} parent=1 // pred_fallthru
      _
    // Predicated region
    $region54: #{tpu_custom_call.1} parent=1 // pred_check
      _
    $region55: #{tpu_custom_call.1} parent=1 // pred_check_branch
      %106 = sbr.rel (0) target = $region57
    $region56: #{tpu_custom_call.1} parent=1 // pred_region
      %107 = dma.done [#allocation7], 512
    $region57: #{tpu_custom_call.1} parent=1 // pred_fallthru
      _
    // Predicated region
    $region58: #{tpu_custom_call.1} parent=1 // pred_check
      _
    $region59: #{tpu_custom_call.1} parent=1 // pred_check_branch
      %109 = sbr.rel (0) target = $region61
    $region60: #{tpu_custom_call.1} parent=1 // pred_region
      %110 = dma.done [#allocation7], 512
    $region61: #{tpu_custom_call.1} parent=1 // pred_fallthru
      _
    // Predicated region
    $region62: #{tpu_custom_call.1} parent=1 // pred_check
      _
    $region63: #{tpu_custom_call.1} parent=1 // pred_check_branch
      %112 = sbr.rel (0) target = $region65
    $region64: #{tpu_custom_call.1} parent=1 // pred_region
      %113 = dma.done [#allocation10], 512
    $region65: #{tpu_custom_call.1} parent=1 // pred_fallthru
      _
    // Predicated region
    $region66: #{tpu_custom_call.1} parent=1 // pred_check
      _
    $region67: #{tpu_custom_call.1} parent=1 // pred_check_branch
      %115 = sbr.rel (0) target = $region69
    $region68: #{tpu_custom_call.1} parent=1 // pred_region
      %116 = dma.done [#allocation10], 512
    $region69: #{tpu_custom_call.1} parent=1 // pred_fallthru
      _
    // Predicated region
    $region70: #{tpu_custom_call.1} parent=1 // pred_check
      _
    $region71: #{tpu_custom_call.1} parent=1 // pred_check_branch
      %118 = sbr.rel (0) target = $region73
    $region72: #{tpu_custom_call.1} parent=1 // pred_region
      %119 = dma.done [#allocation13], 16
    $region73: #{tpu_custom_call.1} parent=1 // pred_fallthru
      _
    %v120 = vld [vmem:[#allocation3] sm:$0xf]
    %v121 = vld [vmem:[%s1] sm:$0xff]
    %v122 = vld [vmem:[%s1 + $0x8] sm:$0xff]
    %v123 = vld [vmem:[%s1 + $0x10] sm:$0xff]
    %v124 = vld [vmem:[%s1 + $0x18] sm:$0xff]
    %v125 = vld [vmem:[%s3] sm:$0x1]
    %v127 = vlaneseq
    %v128 = vshrl.u32 %v127, 7
    %v129 = vsub.s32 0, %v128
    %v130 = vrot.slane %v125, %v129
    %vm132 = vcmask 261120
    %v134 = vsel %vm132, %v120, 0
    %136 = vmatprep.subr.mxu0 0.0
    %137 = vmatpush1.msra.mxu0 %v121
    %138 = vmatprep.subr.mxu0 0.0
    %139 = vmatpush1.msra.mxu0 %v122
    %140 = vmatprep.subr.mxu0 0.0
    %141 = vmatpush1.msra.mxu0 %v123
    %142 = vmatprep.subr.mxu0 0.0
    %143 = vmatpush1.msra.mxu0 %v124
    %144 = vmatprep.subr.mxu0 0.0
    %145 = vmatpush1.msra.mxu0 0.0
    %146 = vmatprep.subr.mxu0 0.0
    %147 = vmatpush1.msra.mxu0 0.0
    %148 = vmatprep.subr.mxu0 0.0
    %149 = vmatpush1.msra.mxu0 0.0
    %150 = vmatprep.subr.mxu0 0.0
    %151 = vmatpush1.msra.mxu0 0.0
    %152 = vmatprep.subr.mxu0 0.0
    %153 = vmatpush1.msra.mxu0 0.0
    %154 = vmatprep.subr.mxu0 0.0
    %155 = vmatpush1.msra.mxu0 0.0
    %156 = vmatprep.subr.mxu0 0.0
    %157 = vmatpush1.msra.mxu0 0.0
    %158 = vmatprep.subr.mxu0 0.0
    %159 = vmatpush1.msra.mxu0 0.0
    %160 = vmatprep.subr.mxu0 0.0
    %161 = vmatpush1.msra.mxu0 0.0
    %162 = vmatprep.subr.mxu0 0.0
    %163 = vmatpush1.msra.mxu0 0.0
    %164 = vmatprep.subr.mxu0 0.0
    %165 = vmatpush1.msra.mxu0 0.0
    %166 = vmatprep.subr.mxu0 0.0
    %167 = vmatpush1.msra.mxu0 0.0
    %168 = vmatprep.subr.mxu0 0.0
    %169 = vmatpush1.msra.mxu0 0.0
    %170 = vmatprep.subr.mxu0 0.0
    %171 = vmatpush1.msra.mxu0 0.0
    %172 = vmatprep.subr.mxu0 0.0
    %173 = vmatpush1.msra.mxu0 0.0
    %174 = vmatprep.subr.mxu0 0.0
    %175 = vmatpush1.msra.mxu0 0.0
    %176 = vmatprep.subr.mxu0 0.0
    %177 = vmatpush1.msra.mxu0 0.0
    %178 = vmatprep.subr.mxu0 0.0
    %179 = vmatpush1.msra.mxu0 0.0
    %180 = vmatprep.subr.mxu0 0.0
    %181 = vmatpush1.msra.mxu0 0.0
    %182 = vmatprep.subr.mxu0 0.0
    %183 = vmatpush1.msra.mxu0 0.0
    %184 = vmatprep.subr.mxu0 0.0
    %185 = vmatpush1.msra.mxu0 0.0
    %186 = vmatprep.subr.mxu0 0.0
    %187 = vmatpush1.msra.mxu0 0.0
    %188 = vmatprep.subr.mxu0 0.0
    %189 = vmatpush1.msra.mxu0 0.0
    %190 = vmatprep.subr.mxu0 0.0
    %191 = vmatpush1.msra.mxu0 0.0
    %192 = vmatprep.subr.mxu0 0.0
    %193 = vmatpush1.msra.mxu0 0.0
    %194 = vmatprep.subr.mxu0 0.0
    %195 = vmatpush1.msra.mxu0 0.0
    %196 = vmatprep.subr.mxu0 0.0
    %197 = vmatpush1.msra.mxu0 0.0
    %198 = vmatprep.subr.mxu0 0.0
    %199 = vmatpush1.msra.mxu0 0.0
    %200 = vmatprep.mubr.f32.mxu0 0.0
    %201 = vmatmul.mubr.f32.gmra.mrb[0].mxu0 %v134
    %v202 = vpop.f32.mrb[0].mxu0
    %v203 = vadd.f32 %v130, %v202
    %v204 = vpop.f32.mrb[0].mxu0
    %205 = vdwg.mxu0
    %v206 = vld [vmem:[#allocation6] sm:$0xff]
    %v207 = vld [vmem:[#allocation6 + $0x8] sm:$0xff]
    %v208 = vld [vmem:[#allocation6 + $0x10] sm:$0xff]
    %v209 = vld [vmem:[#allocation6 + $0x18] sm:$0xff]
    %v210 = vld [vmem:[#allocation8] sm:$0xff]
    %v211 = vld [vmem:[#allocation8 + $0x8] sm:$0xff]
    %v212 = vld [vmem:[#allocation8 + $0x10] sm:$0xff]
    %v213 = vld [vmem:[#allocation8 + $0x18] sm:$0xff]
    %v214 = vld [vmem:[#allocation9] sm:$0xff]
    %v215 = vld [vmem:[#allocation9 + $0x8] sm:$0xff]
    %v216 = vld [vmem:[#allocation9 + $0x10] sm:$0xff]
    %v217 = vld [vmem:[#allocation9 + $0x18] sm:$0xff]
    %v218 = vld [vmem:[%s6] sm:$0x1]
    %v219 = vld [vmem:[%s7] sm:$0xff]
    %v220 = vld [vmem:[%s7 + $0x8] sm:$0xff]
    %v221 = vld [vmem:[%s7 + $0x10] sm:$0xff]
    %v222 = vld [vmem:[%s7 + $0x18] sm:$0xff]
    %v223 = vld [vmem:[#allocation11] sm:$0xff]
    %v224 = vld [vmem:[#allocation11 + $0x8] sm:$0xff]
    %v225 = vld [vmem:[#allocation11 + $0x10] sm:$0xff]
    %v226 = vld [vmem:[#allocation11 + $0x18] sm:$0xff]
    %v227 = vld [vmem:[#allocation12] sm:$0x1]
    %v229 = vsel %vm132, 0.0, 0
    %231 = vmatprep.subr.mxu0 0.0
    %232 = vmatpush1.msra.mxu0 %v206
    %233 = vmatprep.subr.mxu0 0.0
    %234 = vmatpush1.msra.mxu0 %v207
    %235 = vmatprep.subr.mxu0 0.0
    %236 = vmatpush1.msra.mxu0 %v208
    %237 = vmatprep.subr.mxu0 0.0
    %238 = vmatpush1.msra.mxu0 %v209
    %239 = vmatprep.subr.mxu0 0.0
    %240 = vmatpush1.msra.mxu0 0.0
    %241 = vmatprep.subr.mxu0 0.0
    %242 = vmatpush1.msra.mxu0 0.0
    %243 = vmatprep.subr.mxu0 0.0
    %244 = vmatpush1.msra.mxu0 0.0
    %245 = vmatprep.subr.mxu0 0.0
    %246 = vmatpush1.msra.mxu0 0.0
    %247 = vmatprep.subr.mxu0 0.0
    %248 = vmatpush1.msra.mxu0 0.0
    %249 = vmatprep.subr.mxu0 0.0
    %250 = vmatpush1.msra.mxu0 0.0
    %251 = vmatprep.subr.mxu0 0.0
    %252 = vmatpush1.msra.mxu0 0.0
    %253 = vmatprep.subr.mxu0 0.0
    %254 = vmatpush1.msra.mxu0 0.0
    %255 = vmatprep.subr.mxu0 0.0
    %256 = vmatpush1.msra.mxu0 0.0
    %257 = vmatprep.subr.mxu0 0.0
    %258 = vmatpush1.msra.mxu0 0.0
    %259 = vmatprep.subr.mxu0 0.0
    %260 = vmatpush1.msra.mxu0 0.0
    %261 = vmatprep.subr.mxu0 0.0
    %262 = vmatpush1.msra.mxu0 0.0
    %263 = vmatprep.subr.mxu0 0.0
    %264 = vmatpush1.msra.mxu0 0.0
    %265 = vmatprep.subr.mxu0 0.0
    %266 = vmatpush1.msra.mxu0 0.0
    %267 = vmatprep.subr.mxu0 0.0
    %268 = vmatpush1.msra.mxu0 0.0
    %269 = vmatprep.subr.mxu0 0.0
    %270 = vmatpush1.msra.mxu0 0.0
    %271 = vmatprep.subr.mxu0 0.0
    %272 = vmatpush1.msra.mxu0 0.0
    %273 = vmatprep.subr.mxu0 0.0
    %274 = vmatpush1.msra.mxu0 0.0
    %275 = vmatprep.subr.mxu0 0.0
    %276 = vmatpush1.msra.mxu0 0.0
    %277 = vmatprep.subr.mxu0 0.0
    %278 = vmatpush1.msra.mxu0 0.0
    %279 = vmatprep.subr.mxu0 0.0
    %280 = vmatpush1.msra.mxu0 0.0
    %281 = vmatprep.subr.mxu0 0.0
    %282 = vmatpush1.msra.mxu0 0.0
    %283 = vmatprep.subr.mxu0 0.0
    %284 = vmatpush1.msra.mxu0 0.0
    %285 = vmatprep.subr.mxu0 0.0
    %286 = vmatpush1.msra.mxu0 0.0
    %287 = vmatprep.subr.mxu0 0.0
    %288 = vmatpush1.msra.mxu0 0.0
    %289 = vmatprep.subr.mxu0 0.0
    %290 = vmatpush1.msra.mxu0 0.0
    %291 = vmatprep.subr.mxu0 0.0
    %292 = vmatpush1.msra.mxu0 0.0
    %293 = vmatprep.subr.mxu0 0.0
    %294 = vmatpush1.msra.mxu0 0.0
    %295 = vmatprep.mubr.f32.mxu0 0.0
    %296 = vmatmul.mubr.f32.gmra.mrb[0].mxu0 %v229
    %v297 = vpop.f32.mrb[0].mxu0
    %v298 = vadd.f32 0.0, %v297
    %v299 = vpop.f32.mrb[0].mxu0
    %300 = vdwg.mxu0
    %v301 = vadd.f32 %v203, %v298
    %v302 = vxor.u32 %v301, 2147483648
    %v303 = vmul.f32 %v302, 1.442695
    %v304 = vpow.pop %v303
    %v305 = vadd.f32 %v304, 1.0
    %v306 = vrcp.pop %v305
    %v307 = vmul.f32 1.0, %v306
    %v308 = vtanh.pop %v301
    %v309 = vmul.f32 %v307, 0.0
    %311 = vrot.lane.b32.xlu0 %v308, 32
    %v312 = vpop.permute.xlu0 %311
    %v314 = vmul.f32 %v307, %v312
    %316 = vrot.lane.b32.xlu0 %v314, 32
    %v317 = vpop.permute.xlu0 %316
    %v319 = vadd.f32 %v309, %v317
    %v320 = vtanh.pop %v319
    %322 = vrot.lane.b32.xlu0 %v320, 32
    %v323 = vpop.permute.xlu0 %322
    %v325 = vmul.f32 %v307, %v323
    %326 = vmatprep.subr.mxu0 0.0
    %327 = vmatpush1.msra.mxu0 %v214
    %328 = vmatprep.subr.mxu0 0.0
    %329 = vmatpush1.msra.mxu0 %v215
    %330 = vmatprep.subr.mxu0 0.0
    %331 = vmatpush1.msra.mxu0 %v216
    %332 = vmatprep.subr.mxu0 0.0
    %333 = vmatpush1.msra.mxu0 %v217
    %334 = vmatprep.subr.mxu0 0.0
    %335 = vmatpush1.msra.mxu0 0.0
    %336 = vmatprep.subr.mxu0 0.0
    %337 = vmatpush1.msra.mxu0 0.0
    %338 = vmatprep.subr.mxu0 0.0
    %339 = vmatpush1.msra.mxu0 0.0
    %340 = vmatprep.subr.mxu0 0.0
    %341 = vmatpush1.msra.mxu0 0.0
    %342 = vmatprep.subr.mxu0 0.0
    %343 = vmatpush1.msra.mxu0 0.0
    %344 = vmatprep.subr.mxu0 0.0
    %345 = vmatpush1.msra.mxu0 0.0
    %346 = vmatprep.subr.mxu0 0.0
    %347 = vmatpush1.msra.mxu0 0.0
    %348 = vmatprep.subr.mxu0 0.0
    %349 = vmatpush1.msra.mxu0 0.0
    %350 = vmatprep.subr.mxu0 0.0
    %351 = vmatpush1.msra.mxu0 0.0
    %352 = vmatprep.subr.mxu0 0.0
    %353 = vmatpush1.msra.mxu0 0.0
    %354 = vmatprep.subr.mxu0 0.0
    %355 = vmatpush1.msra.mxu0 0.0
    %356 = vmatprep.subr.mxu0 0.0
    %357 = vmatpush1.msra.mxu0 0.0
    %358 = vmatprep.subr.mxu0 0.0
    %359 = vmatpush1.msra.mxu0 0.0
    %360 = vmatprep.subr.mxu0 0.0
    %361 = vmatpush1.msra.mxu0 0.0
    %362 = vmatprep.subr.mxu0 0.0
    %363 = vmatpush1.msra.mxu0 0.0
    %364 = vmatprep.subr.mxu0 0.0
    %365 = vmatpush1.msra.mxu0 0.0
    %366 = vmatprep.subr.mxu0 0.0
    %367 = vmatpush1.msra.mxu0 0.0
    %368 = vmatprep.subr.mxu0 0.0
    %369 = vmatpush1.msra.mxu0 0.0
    %370 = vmatprep.subr.mxu0 0.0
    %371 = vmatpush1.msra.mxu0 0.0
    %372 = vmatprep.subr.mxu0 0.0
    %373 = vmatpush1.msra.mxu0 0.0
    %374 = vmatprep.subr.mxu0 0.0
    %375 = vmatpush1.msra.mxu0 0.0
    %376 = vmatprep.subr.mxu0 0.0
    %377 = vmatpush1.msra.mxu0 0.0
    %378 = vmatprep.subr.mxu0 0.0
    %379 = vmatpush1.msra.mxu0 0.0
    %380 = vmatprep.subr.mxu0 0.0
    %381 = vmatpush1.msra.mxu0 0.0
    %382 = vmatprep.subr.mxu0 0.0
    %383 = vmatpush1.msra.mxu0 0.0
    %384 = vmatprep.subr.mxu0 0.0
    %385 = vmatpush1.msra.mxu0 0.0
    %386 = vmatprep.subr.mxu0 0.0
    %387 = vmatpush1.msra.mxu0 0.0
    %388 = vmatprep.subr.mxu0 0.0
    %389 = vmatpush1.msra.mxu0 0.0
    %390 = vmatprep.mubr.f32.mxu0 0.0
    %391 = vmatmul.mubr.f32.gmra.mrb[0].mxu0 %v229
    %v392 = vpop.f32.mrb[0].mxu0
    %v393 = vadd.f32 0.0, %v392
    %v394 = vpop.f32.mrb[0].mxu0
    %395 = vdwg.mxu0
    %397 = vrot.lane.b32.xlu0 %v325, 64
    %v398 = vpop.permute.xlu0 %397
    %v399 = vsel %vm132, %v398, 0
    %401 = vmatprep.subr.mxu0 0.0
    %402 = vmatpush1.msra.mxu0 %v210
    %403 = vmatprep.subr.mxu0 0.0
    %404 = vmatpush1.msra.mxu0 %v211
    %405 = vmatprep.subr.mxu0 0.0
    %406 = vmatpush1.msra.mxu0 %v212
    %407 = vmatprep.subr.mxu0 0.0
    %408 = vmatpush1.msra.mxu0 %v213
    %409 = vmatprep.subr.mxu0 0.0
    %410 = vmatpush1.msra.mxu0 0.0
    %411 = vmatprep.subr.mxu0 0.0
    %412 = vmatpush1.msra.mxu0 0.0
    %413 = vmatprep.subr.mxu0 0.0
    %414 = vmatpush1.msra.mxu0 0.0
    %415 = vmatprep.subr.mxu0 0.0
    %416 = vmatpush1.msra.mxu0 0.0
    %417 = vmatprep.subr.mxu0 0.0
    %418 = vmatpush1.msra.mxu0 0.0
    %419 = vmatprep.subr.mxu0 0.0
    %420 = vmatpush1.msra.mxu0 0.0
    %421 = vmatprep.subr.mxu0 0.0
    %422 = vmatpush1.msra.mxu0 0.0
    %423 = vmatprep.subr.mxu0 0.0
    %424 = vmatpush1.msra.mxu0 0.0
    %425 = vmatprep.subr.mxu0 0.0
    %426 = vmatpush1.msra.mxu0 0.0
    %427 = vmatprep.subr.mxu0 0.0
    %428 = vmatpush1.msra.mxu0 0.0
    %429 = vmatprep.subr.mxu0 0.0
    %430 = vmatpush1.msra.mxu0 0.0
    %431 = vmatprep.subr.mxu0 0.0
    %432 = vmatpush1.msra.mxu0 0.0
    %433 = vmatprep.subr.mxu0 0.0
    %434 = vmatpush1.msra.mxu0 0.0
    %435 = vmatprep.subr.mxu0 0.0
    %436 = vmatpush1.msra.mxu0 0.0
    %437 = vmatprep.subr.mxu0 0.0
    %438 = vmatpush1.msra.mxu0 0.0
    %439 = vmatprep.subr.mxu0 0.0
    %440 = vmatpush1.msra.mxu0 0.0
    %441 = vmatprep.subr.mxu0 0.0
    %442 = vmatpush1.msra.mxu0 0.0
    %443 = vmatprep.subr.mxu0 0.0
    %444 = vmatpush1.msra.mxu0 0.0
    %445 = vmatprep.subr.mxu0 0.0
    %446 = vmatpush1.msra.mxu0 0.0
    %447 = vmatprep.subr.mxu0 0.0
    %448 = vmatpush1.msra.mxu0 0.0
    %449 = vmatprep.subr.mxu0 0.0
    %450 = vmatpush1.msra.mxu0 0.0
    %451 = vmatprep.subr.mxu0 0.0
    %452 = vmatpush1.msra.mxu0 0.0
    %453 = vmatprep.subr.mxu0 0.0
    %454 = vmatpush1.msra.mxu0 0.0
    %455 = vmatprep.subr.mxu0 0.0
    %456 = vmatpush1.msra.mxu0 0.0
    %457 = vmatprep.subr.mxu0 0.0
    %458 = vmatpush1.msra.mxu0 0.0
    %459 = vmatprep.subr.mxu0 0.0
    %460 = vmatpush1.msra.mxu0 0.0
    %461 = vmatprep.subr.mxu0 0.0
    %462 = vmatpush1.msra.mxu0 0.0
    %463 = vmatprep.subr.mxu0 0.0
    %464 = vmatpush1.msra.mxu0 0.0
    %465 = vmatprep.mubr.f32.mxu0 0.0
    %466 = vmatmul.mubr.f32.gmra.mrb[0].mxu0 %v399
    %v467 = vpop.f32.mrb[0].mxu0
    %v468 = vadd.f32 %v393, %v467
    %v469 = vpop.f32.mrb[0].mxu0
    %470 = vdwg.mxu0
    %v471 = vadd.f32 %v468, %v218
    %v472 = vxor.u32 %v471, 2147483648
    %v473 = vmul.f32 %v472, 1.442695
    %v474 = vpow.pop %v473
    %v475 = vadd.f32 %v474, 1.0
    %v476 = vrcp.pop %v475
    %v477 = vmul.f32 1.0, %v476
    %v478 = vtanh.pop %v471
    %v479 = vmul.f32 %v477, 0.0
    %481 = vrot.lane.b32.xlu0 %v478, 32
    %v482 = vpop.permute.xlu0 %481
    %v484 = vmul.f32 %v477, %v482
    %486 = vrot.lane.b32.xlu0 %v484, 32
    %v487 = vpop.permute.xlu0 %486
    %v489 = vadd.f32 %v479, %v487
    %v490 = vtanh.pop %v489
    %492 = vrot.lane.b32.xlu0 %v490, 32
    %v493 = vpop.permute.xlu0 %492
    %v495 = vmul.f32 %v477, %v493
    %496 = vmatprep.subr.mxu0 0.0
    %497 = vmatpush1.msra.mxu0 %v223
    %498 = vmatprep.subr.mxu0 0.0
    %499 = vmatpush1.msra.mxu0 %v224
    %500 = vmatprep.subr.mxu0 0.0
    %501 = vmatpush1.msra.mxu0 %v225
    %502 = vmatprep.subr.mxu0 0.0
    %503 = vmatpush1.msra.mxu0 %v226
    %504 = vmatprep.subr.mxu0 0.0
    %505 = vmatpush1.msra.mxu0 0.0
    %506 = vmatprep.subr.mxu0 0.0
    %507 = vmatpush1.msra.mxu0 0.0
    %508 = vmatprep.subr.mxu0 0.0
    %509 = vmatpush1.msra.mxu0 0.0
    %510 = vmatprep.subr.mxu0 0.0
    %511 = vmatpush1.msra.mxu0 0.0
    %512 = vmatprep.subr.mxu0 0.0
    %513 = vmatpush1.msra.mxu0 0.0
    %514 = vmatprep.subr.mxu0 0.0
    %515 = vmatpush1.msra.mxu0 0.0
    %516 = vmatprep.subr.mxu0 0.0
    %517 = vmatpush1.msra.mxu0 0.0
    %518 = vmatprep.subr.mxu0 0.0
    %519 = vmatpush1.msra.mxu0 0.0
    %520 = vmatprep.subr.mxu0 0.0
    %521 = vmatpush1.msra.mxu0 0.0
    %522 = vmatprep.subr.mxu0 0.0
    %523 = vmatpush1.msra.mxu0 0.0
    %524 = vmatprep.subr.mxu0 0.0
    %525 = vmatpush1.msra.mxu0 0.0
    %526 = vmatprep.subr.mxu0 0.0
    %527 = vmatpush1.msra.mxu0 0.0
    %528 = vmatprep.subr.mxu0 0.0
    %529 = vmatpush1.msra.mxu0 0.0
    %530 = vmatprep.subr.mxu0 0.0
    %531 = vmatpush1.msra.mxu0 0.0
    %532 = vmatprep.subr.mxu0 0.0
    %533 = vmatpush1.msra.mxu0 0.0
    %534 = vmatprep.subr.mxu0 0.0
    %535 = vmatpush1.msra.mxu0 0.0
    %536 = vmatprep.subr.mxu0 0.0
    %537 = vmatpush1.msra.mxu0 0.0
    %538 = vmatprep.subr.mxu0 0.0
    %539 = vmatpush1.msra.mxu0 0.0
    %540 = vmatprep.subr.mxu0 0.0
    %541 = vmatpush1.msra.mxu0 0.0
    %542 = vmatprep.subr.mxu0 0.0
    %543 = vmatpush1.msra.mxu0 0.0
    %544 = vmatprep.subr.mxu0 0.0
    %545 = vmatpush1.msra.mxu0 0.0
    %546 = vmatprep.subr.mxu0 0.0
    %547 = vmatpush1.msra.mxu0 0.0
    %548 = vmatprep.subr.mxu0 0.0
    %549 = vmatpush1.msra.mxu0 0.0
    %550 = vmatprep.subr.mxu0 0.0
    %551 = vmatpush1.msra.mxu0 0.0
    %552 = vmatprep.subr.mxu0 0.0
    %553 = vmatpush1.msra.mxu0 0.0
    %554 = vmatprep.subr.mxu0 0.0
    %555 = vmatpush1.msra.mxu0 0.0
    %556 = vmatprep.subr.mxu0 0.0
    %557 = vmatpush1.msra.mxu0 0.0
    %558 = vmatprep.subr.mxu0 0.0
    %559 = vmatpush1.msra.mxu0 0.0
    %560 = vmatprep.mubr.f32.mxu0 0.0
    %561 = vmatmul.mubr.f32.gmra.mrb[0].mxu0 %v229
    %v562 = vpop.f32.mrb[0].mxu0
    %v563 = vadd.f32 0.0, %v562
    %v564 = vpop.f32.mrb[0].mxu0
    %565 = vdwg.mxu0
    %567 = vrot.lane.b32.xlu0 %v495, 64
    %v568 = vpop.permute.xlu0 %567
    %v569 = vsel %vm132, %v568, 0
    %571 = vmatprep.subr.mxu0 0.0
    %572 = vmatpush1.msra.mxu0 %v219
    %573 = vmatprep.subr.mxu0 0.0
    %574 = vmatpush1.msra.mxu0 %v220
    %575 = vmatprep.subr.mxu0 0.0
    %576 = vmatpush1.msra.mxu0 %v221
    %577 = vmatprep.subr.mxu0 0.0
    %578 = vmatpush1.msra.mxu0 %v222
    %579 = vmatprep.subr.mxu0 0.0
    %580 = vmatpush1.msra.mxu0 0.0
    %581 = vmatprep.subr.mxu0 0.0
    %582 = vmatpush1.msra.mxu0 0.0
    %583 = vmatprep.subr.mxu0 0.0
    %584 = vmatpush1.msra.mxu0 0.0
    %585 = vmatprep.subr.mxu0 0.0
    %586 = vmatpush1.msra.mxu0 0.0
    %587 = vmatprep.subr.mxu0 0.0
    %588 = vmatpush1.msra.mxu0 0.0
    %589 = vmatprep.subr.mxu0 0.0
    %590 = vmatpush1.msra.mxu0 0.0
    %591 = vmatprep.subr.mxu0 0.0
    %592 = vmatpush1.msra.mxu0 0.0
    %593 = vmatprep.subr.mxu0 0.0
    %594 = vmatpush1.msra.mxu0 0.0
    %595 = vmatprep.subr.mxu0 0.0
    %596 = vmatpush1.msra.mxu0 0.0
    %597 = vmatprep.subr.mxu0 0.0
    %598 = vmatpush1.msra.mxu0 0.0
    %599 = vmatprep.subr.mxu0 0.0
    %600 = vmatpush1.msra.mxu0 0.0
    %601 = vmatprep.subr.mxu0 0.0
    %602 = vmatpush1.msra.mxu0 0.0
    %603 = vmatprep.subr.mxu0 0.0
    %604 = vmatpush1.msra.mxu0 0.0
    %605 = vmatprep.subr.mxu0 0.0
    %606 = vmatpush1.msra.mxu0 0.0
    %607 = vmatprep.subr.mxu0 0.0
    %608 = vmatpush1.msra.mxu0 0.0
    %609 = vmatprep.subr.mxu0 0.0
    %610 = vmatpush1.msra.mxu0 0.0
    %611 = vmatprep.subr.mxu0 0.0
    %612 = vmatpush1.msra.mxu0 0.0
    %613 = vmatprep.subr.mxu0 0.0
    %614 = vmatpush1.msra.mxu0 0.0
    %615 = vmatprep.subr.mxu0 0.0
    %616 = vmatpush1.msra.mxu0 0.0
    %617 = vmatprep.subr.mxu0 0.0
    %618 = vmatpush1.msra.mxu0 0.0
    %619 = vmatprep.subr.mxu0 0.0
    %620 = vmatpush1.msra.mxu0 0.0
    %621 = vmatprep.subr.mxu0 0.0
    %622 = vmatpush1.msra.mxu0 0.0
    %623 = vmatprep.subr.mxu0 0.0
    %624 = vmatpush1.msra.mxu0 0.0
    %625 = vmatprep.subr.mxu0 0.0
    %626 = vmatpush1.msra.mxu0 0.0
    %627 = vmatprep.subr.mxu0 0.0
    %628 = vmatpush1.msra.mxu0 0.0
    %629 = vmatprep.subr.mxu0 0.0
    %630 = vmatpush1.msra.mxu0 0.0
    %631 = vmatprep.subr.mxu0 0.0
    %632 = vmatpush1.msra.mxu0 0.0
    %633 = vmatprep.subr.mxu0 0.0
    %634 = vmatpush1.msra.mxu0 0.0
    %635 = vmatprep.mubr.f32.mxu0 0.0
    %636 = vmatmul.mubr.f32.gmra.mrb[0].mxu0 %v569
    %v637 = vpop.f32.mrb[0].mxu0
    %v638 = vadd.f32 %v563, %v637
    %v639 = vpop.f32.mrb[0].mxu0
    %640 = vdwg.mxu0
    %v641 = vadd.f32 %v638, %v227
    %v642 = vxor.u32 %v641, 2147483648
    %v643 = vmul.f32 %v642, 1.442695
    %v644 = vpow.pop %v643
    %v645 = vadd.f32 %v644, 1.0
    %v646 = vrcp.pop %v645
    %v647 = vmul.f32 1.0, %v646
    %v648 = vtanh.pop %v641
    %v649 = vmul.f32 %v647, 0.0
    %651 = vrot.lane.b32.xlu0 %v648, 32
    %v652 = vpop.permute.xlu0 %651
    %v654 = vmul.f32 %v647, %v652
    %656 = vrot.lane.b32.xlu0 %v654, 32
    %v657 = vpop.permute.xlu0 %656
    %v659 = vadd.f32 %v649, %v657
    %v660 = vtanh.pop %v659
    %662 = vrot.lane.b32.xlu0 %v660, 32
    %v663 = vpop.permute.xlu0 %662
    %v665 = vmul.f32 %v647, %v663
    %667 = vrot.lane.b32.xlu0 %v665, 64
    %v668 = vpop.permute.xlu0 %667
    %vm670 = vcmask 253952
    %671 = vst.msk [vmem:[#allocation2] sm:$0x1] %vm670, %v668
    %672 = vmatprep.subr.mxu0 0.0
    %673 = vmatpush1.msra.mxu0 %v206
    %674 = vmatprep.subr.mxu0 0.0
    %675 = vmatpush1.msra.mxu0 %v207
    %676 = vmatprep.subr.mxu0 0.0
    %677 = vmatpush1.msra.mxu0 %v208
    %678 = vmatprep.subr.mxu0 0.0
    %679 = vmatpush1.msra.mxu0 %v209
    %680 = vmatprep.subr.mxu0 0.0
    %681 = vmatpush1.msra.mxu0 0.0
    %682 = vmatprep.subr.mxu0 0.0
    %683 = vmatpush1.msra.mxu0 0.0
    %684 = vmatprep.subr.mxu0 0.0
    %685 = vmatpush1.msra.mxu0 0.0
    %686 = vmatprep.subr.mxu0 0.0
    %687 = vmatpush1.msra.mxu0 0.0
    %688 = vmatprep.subr.mxu0 0.0
    %689 = vmatpush1.msra.mxu0 0.0
    %690 = vmatprep.subr.mxu0 0.0
    %691 = vmatpush1.msra.mxu0 0.0
    %692 = vmatprep.subr.mxu0 0.0
    %693 = vmatpush1.msra.mxu0 0.0
    %694 = vmatprep.subr.mxu0 0.0
    %695 = vmatpush1.msra.mxu0 0.0
    %696 = vmatprep.subr.mxu0 0.0
    %697 = vmatpush1.msra.mxu0 0.0
    %698 = vmatprep.subr.mxu0 0.0
    %699 = vmatpush1.msra.mxu0 0.0
    %700 = vmatprep.subr.mxu0 0.0
    %701 = vmatpush1.msra.mxu0 0.0
    %702 = vmatprep.subr.mxu0 0.0
    %703 = vmatpush1.msra.mxu0 0.0
    %704 = vmatprep.subr.mxu0 0.0
    %705 = vmatpush1.msra.mxu0 0.0
    %706 = vmatprep.subr.mxu0 0.0
    %707 = vmatpush1.msra.mxu0 0.0
    %708 = vmatprep.subr.mxu0 0.0
    %709 = vmatpush1.msra.mxu0 0.0
    %710 = vmatprep.subr.mxu0 0.0
    %711 = vmatpush1.msra.mxu0 0.0
    %712 = vmatprep.subr.mxu0 0.0
    %713 = vmatpush1.msra.mxu0 0.0
    %714 = vmatprep.subr.mxu0 0.0
    %715 = vmatpush1.msra.mxu0 0.0
    %716 = vmatprep.subr.mxu0 0.0
    %717 = vmatpush1.msra.mxu0 0.0
    %718 = vmatprep.subr.mxu0 0.0
    %719 = vmatpush1.msra.mxu0 0.0
    %720 = vmatprep.subr.mxu0 0.0
    %721 = vmatpush1.msra.mxu0 0.0
    %722 = vmatprep.subr.mxu0 0.0
    %723 = vmatpush1.msra.mxu0 0.0
    %724 = vmatprep.subr.mxu0 0.0
    %725 = vmatpush1.msra.mxu0 0.0
    %726 = vmatprep.subr.mxu0 0.0
    %727 = vmatpush1.msra.mxu0 0.0
    %728 = vmatprep.subr.mxu0 0.0
    %729 = vmatpush1.msra.mxu0 0.0
    %730 = vmatprep.subr.mxu0 0.0
    %731 = vmatpush1.msra.mxu0 0.0
    %732 = vmatprep.subr.mxu0 0.0
    %733 = vmatpush1.msra.mxu0 0.0
    %734 = vmatprep.subr.mxu0 0.0
    %735 = vmatpush1.msra.mxu0 0.0
    %736 = vmatprep.mubr.f32.mxu0 0.0
    %737 = vmatmul.mubr.f32.gmra.mrb[0].mxu0 %v399
    %v738 = vpop.f32.mrb[0].mxu0
    %v739 = vadd.f32 0.0, %v738
    %v740 = vpop.f32.mrb[0].mxu0
    %741 = vdwg.mxu0
    %v743 = vrot.slane %v739, 7
    %v745 = vadd.f32 %v203, %v743
    %v746 = vxor.u32 %v745, 2147483648
    %v747 = vmul.f32 %v746, 1.442695
    %v748 = vpow.pop %v747
    %v749 = vadd.f32 %v748, 1.0
    %v750 = vrcp.pop %v749
    %v751 = vmul.f32 1.0, %v750
    %v752 = vtanh.pop %v745
    %v754 = vrot.slane %v319, 7
    %v756 = vmul.f32 %v751, %v754
    %758 = vrot.lane.b32.xlu0 %v752, 32
    %v759 = vpop.permute.xlu0 %758
    %v761 = vmul.f32 %v751, %v759
    %763 = vrot.lane.b32.xlu0 %v761, 32
    %v764 = vpop.permute.xlu0 %763
    %v766 = vadd.f32 %v756, %v764
    %v767 = vtanh.pop %v766
    %769 = vrot.lane.b32.xlu0 %v767, 32
    %v770 = vpop.permute.xlu0 %769
    %v772 = vmul.f32 %v751, %v770
    %773 = vmatprep.subr.mxu0 0.0
    %774 = vmatpush1.msra.mxu0 %v214
    %775 = vmatprep.subr.mxu0 0.0
    %776 = vmatpush1.msra.mxu0 %v215
    %777 = vmatprep.subr.mxu0 0.0
    %778 = vmatpush1.msra.mxu0 %v216
    %779 = vmatprep.subr.mxu0 0.0
    %780 = vmatpush1.msra.mxu0 %v217
    %781 = vmatprep.subr.mxu0 0.0
    %782 = vmatpush1.msra.mxu0 0.0
    %783 = vmatprep.subr.mxu0 0.0
    %784 = vmatpush1.msra.mxu0 0.0
    %785 = vmatprep.subr.mxu0 0.0
    %786 = vmatpush1.msra.mxu0 0.0
    %787 = vmatprep.subr.mxu0 0.0
    %788 = vmatpush1.msra.mxu0 0.0
    %789 = vmatprep.subr.mxu0 0.0
    %790 = vmatpush1.msra.mxu0 0.0
    %791 = vmatprep.subr.mxu0 0.0
    %792 = vmatpush1.msra.mxu0 0.0
    %793 = vmatprep.subr.mxu0 0.0
    %794 = vmatpush1.msra.mxu0 0.0
    %795 = vmatprep.subr.mxu0 0.0
    %796 = vmatpush1.msra.mxu0 0.0
    %797 = vmatprep.subr.mxu0 0.0
    %798 = vmatpush1.msra.mxu0 0.0
    %799 = vmatprep.subr.mxu0 0.0
    %800 = vmatpush1.msra.mxu0 0.0
    %801 = vmatprep.subr.mxu0 0.0
    %802 = vmatpush1.msra.mxu0 0.0
    %803 = vmatprep.subr.mxu0 0.0
    %804 = vmatpush1.msra.mxu0 0.0
    %805 = vmatprep.subr.mxu0 0.0
    %806 = vmatpush1.msra.mxu0 0.0
    %807 = vmatprep.subr.mxu0 0.0
    %808 = vmatpush1.msra.mxu0 0.0
    %809 = vmatprep.subr.mxu0 0.0
    %810 = vmatpush1.msra.mxu0 0.0
    %811 = vmatprep.subr.mxu0 0.0
    %812 = vmatpush1.msra.mxu0 0.0
    %813 = vmatprep.subr.mxu0 0.0
    %814 = vmatpush1.msra.mxu0 0.0
    %815 = vmatprep.subr.mxu0 0.0
    %816 = vmatpush1.msra.mxu0 0.0
    %817 = vmatprep.subr.mxu0 0.0
    %818 = vmatpush1.msra.mxu0 0.0
    %819 = vmatprep.subr.mxu0 0.0
    %820 = vmatpush1.msra.mxu0 0.0
    %821 = vmatprep.subr.mxu0 0.0
    %822 = vmatpush1.msra.mxu0 0.0
    %823 = vmatprep.subr.mxu0 0.0
    %824 = vmatpush1.msra.mxu0 0.0
    %825 = vmatprep.subr.mxu0 0.0
    %826 = vmatpush1.msra.mxu0 0.0
    %827 = vmatprep.subr.mxu0 0.0
    %828 = vmatpush1.msra.mxu0 0.0
    %829 = vmatprep.subr.mxu0 0.0
    %830 = vmatpush1.msra.mxu0 0.0
    %831 = vmatprep.subr.mxu0 0.0
    %832 = vmatpush1.msra.mxu0 0.0
    %833 = vmatprep.subr.mxu0 0.0
    %834 = vmatpush1.msra.mxu0 0.0
    %835 = vmatprep.subr.mxu0 0.0
    %836 = vmatpush1.msra.mxu0 0.0
    %837 = vmatprep.mubr.f32.mxu0 0.0
    %838 = vmatmul.mubr.f32.gmra.mrb[0].mxu0 %v569
    %v839 = vpop.f32.mrb[0].mxu0
    %v840 = vadd.f32 0.0, %v839
    %v841 = vpop.f32.mrb[0].mxu0
    %842 = vdwg.mxu0
    %v844 = vrot.slane %v772, 1
    %845 = vrot.lane.b32.xlu0 %v844, 64
    %v846 = vpop.permute.xlu0 %845
    %v847 = vsel %vm132, %v846, 0
    %849 = vmatprep.subr.mxu0 0.0
    %850 = vmatpush1.msra.mxu0 %v210
    %851 = vmatprep.subr.mxu0 0.0
    %852 = vmatpush1.msra.mxu0 %v211
    %853 = vmatprep.subr.mxu0 0.0
    %854 = vmatpush1.msra.mxu0 %v212
    %855 = vmatprep.subr.mxu0 0.0
    %856 = vmatpush1.msra.mxu0 %v213
    %857 = vmatprep.subr.mxu0 0.0
    %858 = vmatpush1.msra.mxu0 0.0
    %859 = vmatprep.subr.mxu0 0.0
    %860 = vmatpush1.msra.mxu0 0.0
    %861 = vmatprep.subr.mxu0 0.0
    %862 = vmatpush1.msra.mxu0 0.0
    %863 = vmatprep.subr.mxu0 0.0
    %864 = vmatpush1.msra.mxu0 0.0
    %865 = vmatprep.subr.mxu0 0.0
    %866 = vmatpush1.msra.mxu0 0.0
    %867 = vmatprep.subr.mxu0 0.0
    %868 = vmatpush1.msra.mxu0 0.0
    %869 = vmatprep.subr.mxu0 0.0
    %870 = vmatpush1.msra.mxu0 0.0
    %871 = vmatprep.subr.mxu0 0.0
    %872 = vmatpush1.msra.mxu0 0.0
    %873 = vmatprep.subr.mxu0 0.0
    %874 = vmatpush1.msra.mxu0 0.0
    %875 = vmatprep.subr.mxu0 0.0
    %876 = vmatpush1.msra.mxu0 0.0
    %877 = vmatprep.subr.mxu0 0.0
    %878 = vmatpush1.msra.mxu0 0.0
    %879 = vmatprep.subr.mxu0 0.0
    %880 = vmatpush1.msra.mxu0 0.0
    %881 = vmatprep.subr.mxu0 0.0
    %882 = vmatpush1.msra.mxu0 0.0
    %883 = vmatprep.subr.mxu0 0.0
    %884 = vmatpush1.msra.mxu0 0.0
    %885 = vmatprep.subr.mxu0 0.0
    %886 = vmatpush1.msra.mxu0 0.0
    %887 = vmatprep.subr.mxu0 0.0
    %888 = vmatpush1.msra.mxu0 0.0
    %889 = vmatprep.subr.mxu0 0.0
    %890 = vmatpush1.msra.mxu0 0.0
    %891 = vmatprep.subr.mxu0 0.0
    %892 = vmatpush1.msra.mxu0 0.0
    %893 = vmatprep.subr.mxu0 0.0
    %894 = vmatpush1.msra.mxu0 0.0
    %895 = vmatprep.subr.mxu0 0.0
    %896 = vmatpush1.msra.mxu0 0.0
    %897 = vmatprep.subr.mxu0 0.0
    %898 = vmatpush1.msra.mxu0 0.0
    %899 = vmatprep.subr.mxu0 0.0
    %900 = vmatpush1.msra.mxu0 0.0
    %901 = vmatprep.subr.mxu0 0.0
    %902 = vmatpush1.msra.mxu0 0.0
    %903 = vmatprep.subr.mxu0 0.0
    %904 = vmatpush1.msra.mxu0 0.0
    %905 = vmatprep.subr.mxu0 0.0
    %906 = vmatpush1.msra.mxu0 0.0
    %907 = vmatprep.subr.mxu0 0.0
    %908 = vmatpush1.msra.mxu0 0.0
    %909 = vmatprep.subr.mxu0 0.0
    %910 = vmatpush1.msra.mxu0 0.0
    %911 = vmatprep.subr.mxu0 0.0
    %912 = vmatpush1.msra.mxu0 0.0
    %913 = vmatprep.mubr.f32.mxu0 0.0
    %914 = vmatmul.mubr.f32.gmra.mrb[0].mxu0 %v847
    %v915 = vpop.f32.mrb[0].mxu0
    %v916 = vadd.f32 %v840, %v915
    %v917 = vpop.f32.mrb[0].mxu0
    %918 = vdwg.mxu0
    %v919 = vadd.f32 %v916, %v218
    %v920 = vxor.u32 %v919, 2147483648
    %v921 = vmul.f32 %v920, 1.442695
    %v922 = vpow.pop %v921
    %v923 = vadd.f32 %v922, 1.0
    %v924 = vrcp.pop %v923
    %v925 = vmul.f32 1.0, %v924
    %v926 = vtanh.pop %v919
    %v927 = vmul.f32 %v925, %v489
    %929 = vrot.lane.b32.xlu0 %v926, 32
    %v930 = vpop.permute.xlu0 %929
    %v932 = vmul.f32 %v925, %v930
    %934 = vrot.lane.b32.xlu0 %v932, 32
    %v935 = vpop.permute.xlu0 %934
    %v937 = vadd.f32 %v927, %v935
    %v938 = vtanh.pop %v937
    %940 = vrot.lane.b32.xlu0 %v938, 32
    %v941 = vpop.permute.xlu0 %940
    %v943 = vmul.f32 %v925, %v941
    %v944 = vsel %vm132, %v668, 0
    %946 = vmatprep.subr.mxu0 0.0
    %947 = vmatpush1.msra.mxu0 %v223
    %948 = vmatprep.subr.mxu0 0.0
    %949 = vmatpush1.msra.mxu0 %v224
    %950 = vmatprep.subr.mxu0 0.0
    %951 = vmatpush1.msra.mxu0 %v225
    %952 = vmatprep.subr.mxu0 0.0
    %953 = vmatpush1.msra.mxu0 %v226
    %954 = vmatprep.subr.mxu0 0.0
    %955 = vmatpush1.msra.mxu0 0.0
    %956 = vmatprep.subr.mxu0 0.0
    %957 = vmatpush1.msra.mxu0 0.0
    %958 = vmatprep.subr.mxu0 0.0
    %959 = vmatpush1.msra.mxu0 0.0
    %960 = vmatprep.subr.mxu0 0.0
    %961 = vmatpush1.msra.mxu0 0.0
    %962 = vmatprep.subr.mxu0 0.0
    %963 = vmatpush1.msra.mxu0 0.0
    %964 = vmatprep.subr.mxu0 0.0
    %965 = vmatpush1.msra.mxu0 0.0
    %966 = vmatprep.subr.mxu0 0.0
    %967 = vmatpush1.msra.mxu0 0.0
    %968 = vmatprep.subr.mxu0 0.0
    %969 = vmatpush1.msra.mxu0 0.0
    %970 = vmatprep.subr.mxu0 0.0
    %971 = vmatpush1.msra.mxu0 0.0
    %972 = vmatprep.subr.mxu0 0.0
    %973 = vmatpush1.msra.mxu0 0.0
    %974 = vmatprep.subr.mxu0 0.0
    %975 = vmatpush1.msra.mxu0 0.0
    %976 = vmatprep.subr.mxu0 0.0
    %977 = vmatpush1.msra.mxu0 0.0
    %978 = vmatprep.subr.mxu0 0.0
    %979 = vmatpush1.msra.mxu0 0.0
    %980 = vmatprep.subr.mxu0 0.0
    %981 = vmatpush1.msra.mxu0 0.0
    %982 = vmatprep.subr.mxu0 0.0
    %983 = vmatpush1.msra.mxu0 0.0
    %984 = vmatprep.subr.mxu0 0.0
    %985 = vmatpush1.msra.mxu0 0.0
    %986 = vmatprep.subr.mxu0 0.0
    %987 = vmatpush1.msra.mxu0 0.0
    %988 = vmatprep.subr.mxu0 0.0
    %989 = vmatpush1.msra.mxu0 0.0
    %990 = vmatprep.subr.mxu0 0.0
    %991 = vmatpush1.msra.mxu0 0.0
    %992 = vmatprep.subr.mxu0 0.0
    %993 = vmatpush1.msra.mxu0 0.0
    %994 = vmatprep.subr.mxu0 0.0
    %995 = vmatpush1.msra.mxu0 0.0
    %996 = vmatprep.subr.mxu0 0.0
    %997 = vmatpush1.msra.mxu0 0.0
    %998 = vmatprep.subr.mxu0 0.0
    %999 = vmatpush1.msra.mxu0 0.0
    %1000 = vmatprep.subr.mxu0 0.0
    %1001 = vmatpush1.msra.mxu0 0.0
    %1002 = vmatprep.subr.mxu0 0.0
    %1003 = vmatpush1.msra.mxu0 0.0
    %1004 = vmatprep.subr.mxu0 0.0
    %1005 = vmatpush1.msra.mxu0 0.0
    %1006 = vmatprep.subr.mxu0 0.0
    %1007 = vmatpush1.msra.mxu0 0.0
    %1008 = vmatprep.subr.mxu0 0.0
    %1009 = vmatpush1.msra.mxu0 0.0
    %1010 = vmatprep.mubr.f32.mxu0 0.0
    %1011 = vmatmul.mubr.f32.gmra.mrb[0].mxu0 %v944
    %v1012 = vpop.f32.mrb[0].mxu0
    %v1013 = vadd.f32 0.0, %v1012
    %v1014 = vpop.f32.mrb[0].mxu0
    %1015 = vdwg.mxu0
    %1017 = vrot.lane.b32.xlu0 %v943, 64
    %v1018 = vpop.permute.xlu0 %1017
    %v1019 = vsel %vm132, %v1018, 0
    %1021 = vmatprep.subr.mxu0 0.0
    %1022 = vmatpush1.msra.mxu0 %v219
    %1023 = vmatprep.subr.mxu0 0.0
    %1024 = vmatpush1.msra.mxu0 %v220
    %1025 = vmatprep.subr.mxu0 0.0
    %1026 = vmatpush1.msra.mxu0 %v221
    %1027 = vmatprep.subr.mxu0 0.0
    %1028 = vmatpush1.msra.mxu0 %v222
    %1029 = vmatprep.subr.mxu0 0.0
    %1030 = vmatpush1.msra.mxu0 0.0
    %1031 = vmatprep.subr.mxu0 0.0
    %1032 = vmatpush1.msra.mxu0 0.0
    %1033 = vmatprep.subr.mxu0 0.0
    %1034 = vmatpush1.msra.mxu0 0.0
    %1035 = vmatprep.subr.mxu0 0.0
    %1036 = vmatpush1.msra.mxu0 0.0
    %1037 = vmatprep.subr.mxu0 0.0
    %1038 = vmatpush1.msra.mxu0 0.0
    %1039 = vmatprep.subr.mxu0 0.0
    %1040 = vmatpush1.msra.mxu0 0.0
    %1041 = vmatprep.subr.mxu0 0.0
    %1042 = vmatpush1.msra.mxu0 0.0
    %1043 = vmatprep.subr.mxu0 0.0
    %1044 = vmatpush1.msra.mxu0 0.0
    %1045 = vmatprep.subr.mxu0 0.0
    %1046 = vmatpush1.msra.mxu0 0.0
    %1047 = vmatprep.subr.mxu0 0.0
    %1048 = vmatpush1.msra.mxu0 0.0
    %1049 = vmatprep.subr.mxu0 0.0
    %1050 = vmatpush1.msra.mxu0 0.0
    %1051 = vmatprep.subr.mxu0 0.0
    %1052 = vmatpush1.msra.mxu0 0.0
    %1053 = vmatprep.subr.mxu0 0.0
    %1054 = vmatpush1.msra.mxu0 0.0
    %1055 = vmatprep.subr.mxu0 0.0
    %1056 = vmatpush1.msra.mxu0 0.0
    %1057 = vmatprep.subr.mxu0 0.0
    %1058 = vmatpush1.msra.mxu0 0.0
    %1059 = vmatprep.subr.mxu0 0.0
    %1060 = vmatpush1.msra.mxu0 0.0
    %1061 = vmatprep.subr.mxu0 0.0
    %1062 = vmatpush1.msra.mxu0 0.0
    %1063 = vmatprep.subr.mxu0 0.0
    %1064 = vmatpush1.msra.mxu0 0.0
    %1065 = vmatprep.subr.mxu0 0.0
    %1066 = vmatpush1.msra.mxu0 0.0
    %1067 = vmatprep.subr.mxu0 0.0
    %1068 = vmatpush1.msra.mxu0 0.0
    %1069 = vmatprep.subr.mxu0 0.0
    %1070 = vmatpush1.msra.mxu0 0.0
    %1071 = vmatprep.subr.mxu0 0.0
    %1072 = vmatpush1.msra.mxu0 0.0
    %1073 = vmatprep.subr.mxu0 0.0
    %1074 = vmatpush1.msra.mxu0 0.0
    %1075 = vmatprep.subr.mxu0 0.0
    %1076 = vmatpush1.msra.mxu0 0.0
    %1077 = vmatprep.subr.mxu0 0.0
    %1078 = vmatpush1.msra.mxu0 0.0
    %1079 = vmatprep.subr.mxu0 0.0
    %1080 = vmatpush1.msra.mxu0 0.0
    %1081 = vmatprep.subr.mxu0 0.0
    %1082 = vmatpush1.msra.mxu0 0.0
    %1083 = vmatprep.subr.mxu0 0.0
    %1084 = vmatpush1.msra.mxu0 0.0
    %1085 = vmatprep.mubr.f32.mxu0 0.0
    %1086 = vmatmul.mubr.f32.gmra.mrb[0].mxu0 %v1019
    %v1087 = vpop.f32.mrb[0].mxu0
    %v1088 = vadd.f32 %v1013, %v1087
    %v1089 = vpop.f32.mrb[0].mxu0
    %1090 = vdwg.mxu0
    %v1091 = vadd.f32 %v1088, %v227
    %v1092 = vxor.u32 %v1091, 2147483648
    %v1093 = vmul.f32 %v1092, 1.442695
    %v1094 = vpow.pop %v1093
    %v1095 = vadd.f32 %v1094, 1.0
    %v1096 = vrcp.pop %v1095
    %v1097 = vmul.f32 1.0, %v1096
    %v1098 = vtanh.pop %v1091
    %v1099 = vmul.f32 %v1097, %v659
    %1101 = vrot.lane.b32.xlu0 %v1098, 32
    %v1102 = vpop.permute.xlu0 %1101
    %v1104 = vmul.f32 %v1097, %v1102
    %1106 = vrot.lane.b32.xlu0 %v1104, 32
    %v1107 = vpop.permute.xlu0 %1106
    %v1109 = vadd.f32 %v1099, %v1107
    %v1110 = vtanh.pop %v1109
    %1112 = vrot.lane.b32.xlu0 %v1110, 32
    %v1113 = vpop.permute.xlu0 %1112
    %v1115 = vmul.f32 %v1097, %v1113
    %1117 = vrot.lane.b32.xlu0 %v1115, 64
    %v1118 = vpop.permute.xlu0 %1117
    %1120 = vst.msk [vmem:[#allocation2 + $0x1] sm:$0x1] %vm670, %v1118
    %1121 = vmatprep.subr.mxu0 0.0
    %1122 = vmatpush1.msra.mxu0 %v206
    %1123 = vmatprep.subr.mxu0 0.0
    %1124 = vmatpush1.msra.mxu0 %v207
    %1125 = vmatprep.subr.mxu0 0.0
    %1126 = vmatpush1.msra.mxu0 %v208
    %1127 = vmatprep.subr.mxu0 0.0
    %1128 = vmatpush1.msra.mxu0 %v209
    %1129 = vmatprep.subr.mxu0 0.0
    %1130 = vmatpush1.msra.mxu0 0.0
    %1131 = vmatprep.subr.mxu0 0.0
    %1132 = vmatpush1.msra.mxu0 0.0
    %1133 = vmatprep.subr.mxu0 0.0
    %1134 = vmatpush1.msra.mxu0 0.0
    %1135 = vmatprep.subr.mxu0 0.0
    %1136 = vmatpush1.msra.mxu0 0.0
    %1137 = vmatprep.subr.mxu0 0.0
    %1138 = vmatpush1.msra.mxu0 0.0
    %1139 = vmatprep.subr.mxu0 0.0
    %1140 = vmatpush1.msra.mxu0 0.0
    %1141 = vmatprep.subr.mxu0 0.0
    %1142 = vmatpush1.msra.mxu0 0.0
    %1143 = vmatprep.subr.mxu0 0.0
    %1144 = vmatpush1.msra.mxu0 0.0
    %1145 = vmatprep.subr.mxu0 0.0
    %1146 = vmatpush1.msra.mxu0 0.0
    %1147 = vmatprep.subr.mxu0 0.0
    %1148 = vmatpush1.msra.mxu0 0.0
    %1149 = vmatprep.subr.mxu0 0.0
    %1150 = vmatpush1.msra.mxu0 0.0
    %1151 = vmatprep.subr.mxu0 0.0
    %1152 = vmatpush1.msra.mxu0 0.0
    %1153 = vmatprep.subr.mxu0 0.0
    %1154 = vmatpush1.msra.mxu0 0.0
    %1155 = vmatprep.subr.mxu0 0.0
    %1156 = vmatpush1.msra.mxu0 0.0
    %1157 = vmatprep.subr.mxu0 0.0
    %1158 = vmatpush1.msra.mxu0 0.0
    %1159 = vmatprep.subr.mxu0 0.0
    %1160 = vmatpush1.msra.mxu0 0.0
    %1161 = vmatprep.subr.mxu0 0.0
    %1162 = vmatpush1.msra.mxu0 0.0
    %1163 = vmatprep.subr.mxu0 0.0
    %1164 = vmatpush1.msra.mxu0 0.0
    %1165 = vmatprep.subr.mxu0 0.0
    %1166 = vmatpush1.msra.mxu0 0.0
    %1167 = vmatprep.subr.mxu0 0.0
    %1168 = vmatpush1.msra.mxu0 0.0
    %1169 = vmatprep.subr.mxu0 0.0
    %1170 = vmatpush1.msra.mxu0 0.0
    %1171 = vmatprep.subr.mxu0 0.0
    %1172 = vmatpush1.msra.mxu0 0.0
    %1173 = vmatprep.subr.mxu0 0.0
    %1174 = vmatpush1.msra.mxu0 0.0
    %1175 = vmatprep.subr.mxu0 0.0
    %1176 = vmatpush1.msra.mxu0 0.0
    %1177 = vmatprep.subr.mxu0 0.0
    %1178 = vmatpush1.msra.mxu0 0.0
    %1179 = vmatprep.subr.mxu0 0.0
    %1180 = vmatpush1.msra.mxu0 0.0
    %1181 = vmatprep.subr.mxu0 0.0
    %1182 = vmatpush1.msra.mxu0 0.0
    %1183 = vmatprep.subr.mxu0 0.0
    %1184 = vmatpush1.msra.mxu0 0.0
    %1185 = vmatprep.mubr.f32.mxu0 0.0
    %1186 = vmatmul.mubr.f32.gmra.mrb[0].mxu0 %v847
    %v1187 = vpop.f32.mrb[0].mxu0
    %v1188 = vadd.f32 0.0, %v1187
    %v1189 = vpop.f32.mrb[0].mxu0
    %1190 = vdwg.mxu0
    %v1192 = vrot.slane %v1188, 6
    %v1194 = vadd.f32 %v203, %v1192
    %v1195 = vxor.u32 %v1194, 2147483648
    %v1196 = vmul.f32 %v1195, 1.442695
    %v1197 = vpow.pop %v1196
    %v1198 = vadd.f32 %v1197, 1.0
    %v1199 = vrcp.pop %v1198
    %v1200 = vmul.f32 1.0, %v1199
    %v1201 = vtanh.pop %v1194
    %v1203 = vrot.slane %v766, 7
    %v1205 = vmul.f32 %v1200, %v1203
    %1207 = vrot.lane.b32.xlu0 %v1201, 32
    %v1208 = vpop.permute.xlu0 %1207
    %v1210 = vmul.f32 %v1200, %v1208
    %1212 = vrot.lane.b32.xlu0 %v1210, 32
    %v1213 = vpop.permute.xlu0 %1212
    %v1215 = vadd.f32 %v1205, %v1213
    %v1216 = vtanh.pop %v1215
    %1218 = vrot.lane.b32.xlu0 %v1216, 32
    %v1219 = vpop.permute.xlu0 %1218
    %v1221 = vmul.f32 %v1200, %v1219
    %1222 = vmatprep.subr.mxu0 0.0
    %1223 = vmatpush1.msra.mxu0 %v214
    %1224 = vmatprep.subr.mxu0 0.0
    %1225 = vmatpush1.msra.mxu0 %v215
    %1226 = vmatprep.subr.mxu0 0.0
    %1227 = vmatpush1.msra.mxu0 %v216
    %1228 = vmatprep.subr.mxu0 0.0
    %1229 = vmatpush1.msra.mxu0 %v217
    %1230 = vmatprep.subr.mxu0 0.0
    %1231 = vmatpush1.msra.mxu0 0.0
    %1232 = vmatprep.subr.mxu0 0.0
    %1233 = vmatpush1.msra.mxu0 0.0
    %1234 = vmatprep.subr.mxu0 0.0
    %1235 = vmatpush1.msra.mxu0 0.0
    %1236 = vmatprep.subr.mxu0 0.0
    %1237 = vmatpush1.msra.mxu0 0.0
    %1238 = vmatprep.subr.mxu0 0.0
    %1239 = vmatpush1.msra.mxu0 0.0
    %1240 = vmatprep.subr.mxu0 0.0
    %1241 = vmatpush1.msra.mxu0 0.0
    %1242 = vmatprep.subr.mxu0 0.0
    %1243 = vmatpush1.msra.mxu0 0.0
    %1244 = vmatprep.subr.mxu0 0.0
    %1245 = vmatpush1.msra.mxu0 0.0
    %1246 = vmatprep.subr.mxu0 0.0
    %1247 = vmatpush1.msra.mxu0 0.0
    %1248 = vmatprep.subr.mxu0 0.0
    %1249 = vmatpush1.msra.mxu0 0.0
    %1250 = vmatprep.subr.mxu0 0.0
    %1251 = vmatpush1.msra.mxu0 0.0
    %1252 = vmatprep.subr.mxu0 0.0
    %1253 = vmatpush1.msra.mxu0 0.0
    %1254 = vmatprep.subr.mxu0 0.0
    %1255 = vmatpush1.msra.mxu0 0.0
    %1256 = vmatprep.subr.mxu0 0.0
    %1257 = vmatpush1.msra.mxu0 0.0
    %1258 = vmatprep.subr.mxu0 0.0
    %1259 = vmatpush1.msra.mxu0 0.0
    %1260 = vmatprep.subr.mxu0 0.0
    %1261 = vmatpush1.msra.mxu0 0.0
    %1262 = vmatprep.subr.mxu0 0.0
    %1263 = vmatpush1.msra.mxu0 0.0
    %1264 = vmatprep.subr.mxu0 0.0
    %1265 = vmatpush1.msra.mxu0 0.0
    %1266 = vmatprep.subr.mxu0 0.0
    %1267 = vmatpush1.msra.mxu0 0.0
    %1268 = vmatprep.subr.mxu0 0.0
    %1269 = vmatpush1.msra.mxu0 0.0
    %1270 = vmatprep.subr.mxu0 0.0
    %1271 = vmatpush1.msra.mxu0 0.0
    %1272 = vmatprep.subr.mxu0 0.0
    %1273 = vmatpush1.msra.mxu0 0.0
    %1274 = vmatprep.subr.mxu0 0.0
    %1275 = vmatpush1.msra.mxu0 0.0
    %1276 = vmatprep.subr.mxu0 0.0
    %1277 = vmatpush1.msra.mxu0 0.0
    %1278 = vmatprep.subr.mxu0 0.0
    %1279 = vmatpush1.msra.mxu0 0.0
    %1280 = vmatprep.subr.mxu0 0.0
    %1281 = vmatpush1.msra.mxu0 0.0
    %1282 = vmatprep.subr.mxu0 0.0
    %1283 = vmatpush1.msra.mxu0 0.0
    %1284 = vmatprep.subr.mxu0 0.0
    %1285 = vmatpush1.msra.mxu0 0.0
    %1286 = vmatprep.mubr.f32.mxu0 0.0
    %1287 = vmatmul.mubr.f32.gmra.mrb[0].mxu0 %v1019
    %v1288 = vpop.f32.mrb[0].mxu0
    %v1289 = vadd.f32 0.0, %v1288
    %v1290 = vpop.f32.mrb[0].mxu0
    %1291 = vdwg.mxu0
    %v1293 = vrot.slane %v1221, 2
    %1294 = vrot.lane.b32.xlu0 %v1293, 64
    %v1295 = vpop.permute.xlu0 %1294
    %v1296 = vsel %vm132, %v1295, 0
    %1298 = vmatprep.subr.mxu0 0.0
    %1299 = vmatpush1.msra.mxu0 %v210
    %1300 = vmatprep.subr.mxu0 0.0
    %1301 = vmatpush1.msra.mxu0 %v211
    %1302 = vmatprep.subr.mxu0 0.0
    %1303 = vmatpush1.msra.mxu0 %v212
    %1304 = vmatprep.subr.mxu0 0.0
    %1305 = vmatpush1.msra.mxu0 %v213
    %1306 = vmatprep.subr.mxu0 0.0
    %1307 = vmatpush1.msra.mxu0 0.0
    %1308 = vmatprep.subr.mxu0 0.0
    %1309 = vmatpush1.msra.mxu0 0.0
    %1310 = vmatprep.subr.mxu0 0.0
    %1311 = vmatpush1.msra.mxu0 0.0
    %1312 = vmatprep.subr.mxu0 0.0
    %1313 = vmatpush1.msra.mxu0 0.0
    %1314 = vmatprep.subr.mxu0 0.0
    %1315 = vmatpush1.msra.mxu0 0.0
    %1316 = vmatprep.subr.mxu0 0.0
    %1317 = vmatpush1.msra.mxu0 0.0
    %1318 = vmatprep.subr.mxu0 0.0
    %1319 = vmatpush1.msra.mxu0 0.0
    %1320 = vmatprep.subr.mxu0 0.0
    %1321 = vmatpush1.msra.mxu0 0.0
    %1322 = vmatprep.subr.mxu0 0.0
    %1323 = vmatpush1.msra.mxu0 0.0
    %1324 = vmatprep.subr.mxu0 0.0
    %1325 = vmatpush1.msra.mxu0 0.0
    %1326 = vmatprep.subr.mxu0 0.0
    %1327 = vmatpush1.msra.mxu0 0.0
    %1328 = vmatprep.subr.mxu0 0.0
    %1329 = vmatpush1.msra.mxu0 0.0
    %1330 = vmatprep.subr.mxu0 0.0
    %1331 = vmatpush1.msra.mxu0 0.0
    %1332 = vmatprep.subr.mxu0 0.0
    %1333 = vmatpush1.msra.mxu0 0.0
    %1334 = vmatprep.subr.mxu0 0.0
    %1335 = vmatpush1.msra.mxu0 0.0
    %1336 = vmatprep.subr.mxu0 0.0
    %1337 = vmatpush1.msra.mxu0 0.0
    %1338 = vmatprep.subr.mxu0 0.0
    %1339 = vmatpush1.msra.mxu0 0.0
    %1340 = vmatprep.subr.mxu0 0.0
    %1341 = vmatpush1.msra.mxu0 0.0
    %1342 = vmatprep.subr.mxu0 0.0
    %1343 = vmatpush1.msra.mxu0 0.0
    %1344 = vmatprep.subr.mxu0 0.0
    %1345 = vmatpush1.msra.mxu0 0.0
    %1346 = vmatprep.subr.mxu0 0.0
    %1347 = vmatpush1.msra.mxu0 0.0
    %1348 = vmatprep.subr.mxu0 0.0
    %1349 = vmatpush1.msra.mxu0 0.0
    %1350 = vmatprep.subr.mxu0 0.0
    %1351 = vmatpush1.msra.mxu0 0.0
    %1352 = vmatprep.subr.mxu0 0.0
    %1353 = vmatpush1.msra.mxu0 0.0
    %1354 = vmatprep.subr.mxu0 0.0
    %1355 = vmatpush1.msra.mxu0 0.0
    %1356 = vmatprep.subr.mxu0 0.0
    %1357 = vmatpush1.msra.mxu0 0.0
    %1358 = vmatprep.subr.mxu0 0.0
    %1359 = vmatpush1.msra.mxu0 0.0
    %1360 = vmatprep.subr.mxu0 0.0
    %1361 = vmatpush1.msra.mxu0 0.0
    %1362 = vmatprep.mubr.f32.mxu0 0.0
    %1363 = vmatmul.mubr.f32.gmra.mrb[0].mxu0 %v1296
    %v1364 = vpop.f32.mrb[0].mxu0
    %v1365 = vadd.f32 %v1289, %v1364
    %v1366 = vpop.f32.mrb[0].mxu0
    %1367 = vdwg.mxu0
    %v1368 = vadd.f32 %v1365, %v218
    %v1369 = vxor.u32 %v1368, 2147483648
    %v1370 = vmul.f32 %v1369, 1.442695
    %v1371 = vpow.pop %v1370
    %v1372 = vadd.f32 %v1371, 1.0
    %v1373 = vrcp.pop %v1372
    %v1374 = vmul.f32 1.0, %v1373
    %v1375 = vtanh.pop %v1368
    %v1376 = vmul.f32 %v1374, %v937
    %1378 = vrot.lane.b32.xlu0 %v1375, 32
    %v1379 = vpop.permute.xlu0 %1378
    %v1381 = vmul.f32 %v1374, %v1379
    %1383 = vrot.lane.b32.xlu0 %v1381, 32
    %v1384 = vpop.permute.xlu0 %1383
    %v1386 = vadd.f32 %v1376, %v1384
    %v1387 = vtanh.pop %v1386
    %1389 = vrot.lane.b32.xlu0 %v1387, 32
    %v1390 = vpop.permute.xlu0 %1389
    %v1392 = vmul.f32 %v1374, %v1390
    %v1393 = vsel %vm132, %v1118, 0
    %1395 = vmatprep.subr.mxu0 0.0
    %1396 = vmatpush1.msra.mxu0 %v223
    %1397 = vmatprep.subr.mxu0 0.0
    %1398 = vmatpush1.msra.mxu0 %v224
    %1399 = vmatprep.subr.mxu0 0.0
    %1400 = vmatpush1.msra.mxu0 %v225
    %1401 = vmatprep.subr.mxu0 0.0
    %1402 = vmatpush1.msra.mxu0 %v226
    %1403 = vmatprep.subr.mxu0 0.0
    %1404 = vmatpush1.msra.mxu0 0.0
    %1405 = vmatprep.subr.mxu0 0.0
    %1406 = vmatpush1.msra.mxu0 0.0
    %1407 = vmatprep.subr.mxu0 0.0
    %1408 = vmatpush1.msra.mxu0 0.0
    %1409 = vmatprep.subr.mxu0 0.0
    %1410 = vmatpush1.msra.mxu0 0.0
    %1411 = vmatprep.subr.mxu0 0.0
    %1412 = vmatpush1.msra.mxu0 0.0
    %1413 = vmatprep.subr.mxu0 0.0
    %1414 = vmatpush1.msra.mxu0 0.0
    %1415 = vmatprep.subr.mxu0 0.0
    %1416 = vmatpush1.msra.mxu0 0.0
    %1417 = vmatprep.subr.mxu0 0.0
    %1418 = vmatpush1.msra.mxu0 0.0
    %1419 = vmatprep.subr.mxu0 0.0
    %1420 = vmatpush1.msra.mxu0 0.0
    %1421 = vmatprep.subr.mxu0 0.0
    %1422 = vmatpush1.msra.mxu0 0.0
    %1423 = vmatprep.subr.mxu0 0.0
    %1424 = vmatpush1.msra.mxu0 0.0
    %1425 = vmatprep.subr.mxu0 0.0
    %1426 = vmatpush1.msra.mxu0 0.0
    %1427 = vmatprep.subr.mxu0 0.0
    %1428 = vmatpush1.msra.mxu0 0.0
    %1429 = vmatprep.subr.mxu0 0.0
    %1430 = vmatpush1.msra.mxu0 0.0
    %1431 = vmatprep.subr.mxu0 0.0
    %1432 = vmatpush1.msra.mxu0 0.0
    %1433 = vmatprep.subr.mxu0 0.0
    %1434 = vmatpush1.msra.mxu0 0.0
    %1435 = vmatprep.subr.mxu0 0.0
    %1436 = vmatpush1.msra.mxu0 0.0
    %1437 = vmatprep.subr.mxu0 0.0
    %1438 = vmatpush1.msra.mxu0 0.0
    %1439 = vmatprep.subr.mxu0 0.0
    %1440 = vmatpush1.msra.mxu0 0.0
    %1441 = vmatprep.subr.mxu0 0.0
    %1442 = vmatpush1.msra.mxu0 0.0
    %1443 = vmatprep.subr.mxu0 0.0
    %1444 = vmatpush1.msra.mxu0 0.0
    %1445 = vmatprep.subr.mxu0 0.0
    %1446 = vmatpush1.msra.mxu0 0.0
    %1447 = vmatprep.subr.mxu0 0.0
    %1448 = vmatpush1.msra.mxu0 0.0
    %1449 = vmatprep.subr.mxu0 0.0
    %1450 = vmatpush1.msra.mxu0 0.0
    %1451 = vmatprep.subr.mxu0 0.0
    %1452 = vmatpush1.msra.mxu0 0.0
    %1453 = vmatprep.subr.mxu0 0.0
    %1454 = vmatpush1.msra.mxu0 0.0
    %1455 = vmatprep.subr.mxu0 0.0
    %1456 = vmatpush1.msra.mxu0 0.0
    %1457 = vmatprep.subr.mxu0 0.0
    %1458 = vmatpush1.msra.mxu0 0.0
    %1459 = vmatprep.mubr.f32.mxu0 0.0
    %1460 = vmatmul.mubr.f32.gmra.mrb[0].mxu0 %v1393
    %v1461 = vpop.f32.mrb[0].mxu0
    %v1462 = vadd.f32 0.0, %v1461
    %v1463 = vpop.f32.mrb[0].mxu0
    %1464 = vdwg.mxu0
    %1466 = vrot.lane.b32.xlu0 %v1392, 64
    %v1467 = vpop.permute.xlu0 %1466
    %v1468 = vsel %vm132, %v1467, 0
    %1470 = vmatprep.subr.mxu0 0.0
    %1471 = vmatpush1.msra.mxu0 %v219
    %1472 = vmatprep.subr.mxu0 0.0
    %1473 = vmatpush1.msra.mxu0 %v220
    %1474 = vmatprep.subr.mxu0 0.0
    %1475 = vmatpush1.msra.mxu0 %v221
    %1476 = vmatprep.subr.mxu0 0.0
    %1477 = vmatpush1.msra.mxu0 %v222
    %1478 = vmatprep.subr.mxu0 0.0
    %1479 = vmatpush1.msra.mxu0 0.0
    %1480 = vmatprep.subr.mxu0 0.0
    %1481 = vmatpush1.msra.mxu0 0.0
    %1482 = vmatprep.subr.mxu0 0.0
    %1483 = vmatpush1.msra.mxu0 0.0
    %1484 = vmatprep.subr.mxu0 0.0
    %1485 = vmatpush1.msra.mxu0 0.0
    %1486 = vmatprep.subr.mxu0 0.0
    %1487 = vmatpush1.msra.mxu0 0.0
    %1488 = vmatprep.subr.mxu0 0.0
    %1489 = vmatpush1.msra.mxu0 0.0
    %1490 = vmatprep.subr.mxu0 0.0
    %1491 = vmatpush1.msra.mxu0 0.0
    %1492 = vmatprep.subr.mxu0 0.0
    %1493 = vmatpush1.msra.mxu0 0.0
    %1494 = vmatprep.subr.mxu0 0.0
    %1495 = vmatpush1.msra.mxu0 0.0
    %1496 = vmatprep.subr.mxu0 0.0
    %1497 = vmatpush1.msra.mxu0 0.0
    %1498 = vmatprep.subr.mxu0 0.0
    %1499 = vmatpush1.msra.mxu0 0.0
    %1500 = vmatprep.subr.mxu0 0.0
    %1501 = vmatpush1.msra.mxu0 0.0
    %1502 = vmatprep.subr.mxu0 0.0
    %1503 = vmatpush1.msra.mxu0 0.0
    %1504 = vmatprep.subr.mxu0 0.0
    %1505 = vmatpush1.msra.mxu0 0.0
    %1506 = vmatprep.subr.mxu0 0.0
    %1507 = vmatpush1.msra.mxu0 0.0
    %1508 = vmatprep.subr.mxu0 0.0
    %1509 = vmatpush1.msra.mxu0 0.0
    %1510 = vmatprep.subr.mxu0 0.0
    %1511 = vmatpush1.msra.mxu0 0.0
    %1512 = vmatprep.subr.mxu0 0.0
    %1513 = vmatpush1.msra.mxu0 0.0
    %1514 = vmatprep.subr.mxu0 0.0
    %1515 = vmatpush1.msra.mxu0 0.0
    %1516 = vmatprep.subr.mxu0 0.0
    %1517 = vmatpush1.msra.mxu0 0.0
    %1518 = vmatprep.subr.mxu0 0.0
    %1519 = vmatpush1.msra.mxu0 0.0
    %1520 = vmatprep.subr.mxu0 0.0
    %1521 = vmatpush1.msra.mxu0 0.0
    %1522 = vmatprep.subr.mxu0 0.0
    %1523 = vmatpush1.msra.mxu0 0.0
    %1524 = vmatprep.subr.mxu0 0.0
    %1525 = vmatpush1.msra.mxu0 0.0
    %1526 = vmatprep.subr.mxu0 0.0
    %1527 = vmatpush1.msra.mxu0 0.0
    %1528 = vmatprep.subr.mxu0 0.0
    %1529 = vmatpush1.msra.mxu0 0.0
    %1530 = vmatprep.subr.mxu0 0.0
    %1531 = vmatpush1.msra.mxu0 0.0
    %1532 = vmatprep.subr.mxu0 0.0
    %1533 = vmatpush1.msra.mxu0 0.0
    %1534 = vmatprep.mubr.f32.mxu0 0.0
    %1535 = vmatmul.mubr.f32.gmra.mrb[0].mxu0 %v1468
    %v1536 = vpop.f32.mrb[0].mxu0
    %v1537 = vadd.f32 %v1462, %v1536
    %v1538 = vpop.f32.mrb[0].mxu0
    %1539 = vdwg.mxu0
    %v1540 = vadd.f32 %v1537, %v227
    %v1541 = vxor.u32 %v1540, 2147483648
    %v1542 = vmul.f32 %v1541, 1.442695
    %v1543 = vpow.pop %v1542
    %v1544 = vadd.f32 %v1543, 1.0
    %v1545 = vrcp.pop %v1544
    %v1546 = vmul.f32 1.0, %v1545
    %v1547 = vtanh.pop %v1540
    %v1548 = vmul.f32 %v1546, %v1109
    %1550 = vrot.lane.b32.xlu0 %v1547, 32
    %v1551 = vpop.permute.xlu0 %1550
    %v1553 = vmul.f32 %v1546, %v1551
    %1555 = vrot.lane.b32.xlu0 %v1553, 32
    %v1556 = vpop.permute.xlu0 %1555
    %v1558 = vadd.f32 %v1548, %v1556
    %v1559 = vtanh.pop %v1558
    %1561 = vrot.lane.b32.xlu0 %v1559, 32
    %v1562 = vpop.permute.xlu0 %1561
    %v1564 = vmul.f32 %v1546, %v1562
    %1566 = vrot.lane.b32.xlu0 %v1564, 64
    %v1567 = vpop.permute.xlu0 %1566
    %1569 = vst.msk [vmem:[#allocation2 + $0x2] sm:$0x1] %vm670, %v1567
    %1570 = vmatprep.subr.mxu0 0.0
    %1571 = vmatpush1.msra.mxu0 %v206
    %1572 = vmatprep.subr.mxu0 0.0
    %1573 = vmatpush1.msra.mxu0 %v207
    %1574 = vmatprep.subr.mxu0 0.0
    %1575 = vmatpush1.msra.mxu0 %v208
    %1576 = vmatprep.subr.mxu0 0.0
    %1577 = vmatpush1.msra.mxu0 %v209
    %1578 = vmatprep.subr.mxu0 0.0
    %1579 = vmatpush1.msra.mxu0 0.0
    %1580 = vmatprep.subr.mxu0 0.0
    %1581 = vmatpush1.msra.mxu0 0.0
    %1582 = vmatprep.subr.mxu0 0.0
    %1583 = vmatpush1.msra.mxu0 0.0
    %1584 = vmatprep.subr.mxu0 0.0
    %1585 = vmatpush1.msra.mxu0 0.0
    %1586 = vmatprep.subr.mxu0 0.0
    %1587 = vmatpush1.msra.mxu0 0.0
    %1588 = vmatprep.subr.mxu0 0.0
    %1589 = vmatpush1.msra.mxu0 0.0
    %1590 = vmatprep.subr.mxu0 0.0
    %1591 = vmatpush1.msra.mxu0 0.0
    %1592 = vmatprep.subr.mxu0 0.0
    %1593 = vmatpush1.msra.mxu0 0.0
    %1594 = vmatprep.subr.mxu0 0.0
    %1595 = vmatpush1.msra.mxu0 0.0
    %1596 = vmatprep.subr.mxu0 0.0
    %1597 = vmatpush1.msra.mxu0 0.0
    %1598 = vmatprep.subr.mxu0 0.0
    %1599 = vmatpush1.msra.mxu0 0.0
    %1600 = vmatprep.subr.mxu0 0.0
    %1601 = vmatpush1.msra.mxu0 0.0
    %1602 = vmatprep.subr.mxu0 0.0
    %1603 = vmatpush1.msra.mxu0 0.0
    %1604 = vmatprep.subr.mxu0 0.0
    %1605 = vmatpush1.msra.mxu0 0.0
    %1606 = vmatprep.subr.mxu0 0.0
    %1607 = vmatpush1.msra.mxu0 0.0
    %1608 = vmatprep.subr.mxu0 0.0
    %1609 = vmatpush1.msra.mxu0 0.0
    %1610 = vmatprep.subr.mxu0 0.0
    %1611 = vmatpush1.msra.mxu0 0.0
    %1612 = vmatprep.subr.mxu0 0.0
    %1613 = vmatpush1.msra.mxu0 0.0
    %1614 = vmatprep.subr.mxu0 0.0
    %1615 = vmatpush1.msra.mxu0 0.0
    %1616 = vmatprep.subr.mxu0 0.0
    %1617 = vmatpush1.msra.mxu0 0.0
    %1618 = vmatprep.subr.mxu0 0.0
    %1619 = vmatpush1.msra.mxu0 0.0
    %1620 = vmatprep.subr.mxu0 0.0
    %1621 = vmatpush1.msra.mxu0 0.0
    %1622 = vmatprep.subr.mxu0 0.0
    %1623 = vmatpush1.msra.mxu0 0.0
    %1624 = vmatprep.subr.mxu0 0.0
    %1625 = vmatpush1.msra.mxu0 0.0
    %1626 = vmatprep.subr.mxu0 0.0
    %1627 = vmatpush1.msra.mxu0 0.0
    %1628 = vmatprep.subr.mxu0 0.0
    %1629 = vmatpush1.msra.mxu0 0.0
    %1630 = vmatprep.subr.mxu0 0.0
    %1631 = vmatpush1.msra.mxu0 0.0
    %1632 = vmatprep.subr.mxu0 0.0
    %1633 = vmatpush1.msra.mxu0 0.0
    %1634 = vmatprep.mubr.f32.mxu0 0.0
    %1635 = vmatmul.mubr.f32.gmra.mrb[0].mxu0 %v1296
    %v1636 = vpop.f32.mrb[0].mxu0
    %v1637 = vadd.f32 0.0, %v1636
    %v1638 = vpop.f32.mrb[0].mxu0
    %1639 = vdwg.mxu0
    %v1641 = vrot.slane %v1637, 5
    %v1643 = vadd.f32 %v203, %v1641
    %v1644 = vxor.u32 %v1643, 2147483648
    %v1645 = vmul.f32 %v1644, 1.442695
    %v1646 = vpow.pop %v1645
    %v1647 = vadd.f32 %v1646, 1.0
    %v1648 = vrcp.pop %v1647
    %v1649 = vmul.f32 1.0, %v1648
    %v1650 = vtanh.pop %v1643
    %v1652 = vrot.slane %v1215, 7
    %v1654 = vmul.f32 %v1649, %v1652
    %1656 = vrot.lane.b32.xlu0 %v1650, 32
    %v1657 = vpop.permute.xlu0 %1656
    %v1659 = vmul.f32 %v1649, %v1657
    %1661 = vrot.lane.b32.xlu0 %v1659, 32
    %v1662 = vpop.permute.xlu0 %1661
    %v1664 = vadd.f32 %v1654, %v1662
    %v1665 = vtanh.pop %v1664
    %1667 = vrot.lane.b32.xlu0 %v1665, 32
    %v1668 = vpop.permute.xlu0 %1667
    %v1670 = vmul.f32 %v1649, %v1668
    %1671 = vmatprep.subr.mxu0 0.0
    %1672 = vmatpush1.msra.mxu0 %v214
    %1673 = vmatprep.subr.mxu0 0.0
    %1674 = vmatpush1.msra.mxu0 %v215
    %1675 = vmatprep.subr.mxu0 0.0
    %1676 = vmatpush1.msra.mxu0 %v216
    %1677 = vmatprep.subr.mxu0 0.0
    %1678 = vmatpush1.msra.mxu0 %v217
    %1679 = vmatprep.subr.mxu0 0.0
    %1680 = vmatpush1.msra.mxu0 0.0
    %1681 = vmatprep.subr.mxu0 0.0
    %1682 = vmatpush1.msra.mxu0 0.0
    %1683 = vmatprep.subr.mxu0 0.0
    %1684 = vmatpush1.msra.mxu0 0.0
    %1685 = vmatprep.subr.mxu0 0.0
    %1686 = vmatpush1.msra.mxu0 0.0
    %1687 = vmatprep.subr.mxu0 0.0
    %1688 = vmatpush1.msra.mxu0 0.0
    %1689 = vmatprep.subr.mxu0 0.0
    %1690 = vmatpush1.msra.mxu0 0.0
    %1691 = vmatprep.subr.mxu0 0.0
    %1692 = vmatpush1.msra.mxu0 0.0
    %1693 = vmatprep.subr.mxu0 0.0
    %1694 = vmatpush1.msra.mxu0 0.0
    %1695 = vmatprep.subr.mxu0 0.0
    %1696 = vmatpush1.msra.mxu0 0.0
    %1697 = vmatprep.subr.mxu0 0.0
    %1698 = vmatpush1.msra.mxu0 0.0
    %1699 = vmatprep.subr.mxu0 0.0
    %1700 = vmatpush1.msra.mxu0 0.0
    %1701 = vmatprep.subr.mxu0 0.0
    %1702 = vmatpush1.msra.mxu0 0.0
    %1703 = vmatprep.subr.mxu0 0.0
    %1704 = vmatpush1.msra.mxu0 0.0
    %1705 = vmatprep.subr.mxu0 0.0
    %1706 = vmatpush1.msra.mxu0 0.0
    %1707 = vmatprep.subr.mxu0 0.0
    %1708 = vmatpush1.msra.mxu0 0.0
    %1709 = vmatprep.subr.mxu0 0.0
    %1710 = vmatpush1.msra.mxu0 0.0
    %1711 = vmatprep.subr.mxu0 0.0
    %1712 = vmatpush1.msra.mxu0 0.0
    %1713 = vmatprep.subr.mxu0 0.0
    %1714 = vmatpush1.msra.mxu0 0.0
    %1715 = vmatprep.subr.mxu0 0.0
    %1716 = vmatpush1.msra.mxu0 0.0
    %1717 = vmatprep.subr.mxu0 0.0
    %1718 = vmatpush1.msra.mxu0 0.0
    %1719 = vmatprep.subr.mxu0 0.0
    %1720 = vmatpush1.msra.mxu0 0.0
    %1721 = vmatprep.subr.mxu0 0.0
    %1722 = vmatpush1.msra.mxu0 0.0
    %1723 = vmatprep.subr.mxu0 0.0
    %1724 = vmatpush1.msra.mxu0 0.0
    %1725 = vmatprep.subr.mxu0 0.0
    %1726 = vmatpush1.msra.mxu0 0.0
    %1727 = vmatprep.subr.mxu0 0.0
    %1728 = vmatpush1.msra.mxu0 0.0
    %1729 = vmatprep.subr.mxu0 0.0
    %1730 = vmatpush1.msra.mxu0 0.0
    %1731 = vmatprep.subr.mxu0 0.0
    %1732 = vmatpush1.msra.mxu0 0.0
    %1733 = vmatprep.subr.mxu0 0.0
    %1734 = vmatpush1.msra.mxu0 0.0
    %1735 = vmatprep.mubr.f32.mxu0 0.0
    %1736 = vmatmul.mubr.f32.gmra.mrb[0].mxu0 %v1468
    %v1737 = vpop.f32.mrb[0].mxu0
    %v1738 = vadd.f32 0.0, %v1737
    %v1739 = vpop.f32.mrb[0].mxu0
    %1740 = vdwg.mxu0
    %v1742 = vrot.slane %v1670, 3
    %1743 = vrot.lane.b32.xlu0 %v1742, 64
    %v1744 = vpop.permute.xlu0 %1743
    %v1745 = vsel %vm132, %v1744, 0
    %1747 = vmatprep.subr.mxu0 0.0
    %1748 = vmatpush1.msra.mxu0 %v210
    %1749 = vmatprep.subr.mxu0 0.0
    %1750 = vmatpush1.msra.mxu0 %v211
    %1751 = vmatprep.subr.mxu0 0.0
    %1752 = vmatpush1.msra.mxu0 %v212
    %1753 = vmatprep.subr.mxu0 0.0
    %1754 = vmatpush1.msra.mxu0 %v213
    %1755 = vmatprep.subr.mxu0 0.0
    %1756 = vmatpush1.msra.mxu0 0.0
    %1757 = vmatprep.subr.mxu0 0.0
    %1758 = vmatpush1.msra.mxu0 0.0
    %1759 = vmatprep.subr.mxu0 0.0
    %1760 = vmatpush1.msra.mxu0 0.0
    %1761 = vmatprep.subr.mxu0 0.0
    %1762 = vmatpush1.msra.mxu0 0.0
    %1763 = vmatprep.subr.mxu0 0.0
    %1764 = vmatpush1.msra.mxu0 0.0
    %1765 = vmatprep.subr.mxu0 0.0
    %1766 = vmatpush1.msra.mxu0 0.0
    %1767 = vmatprep.subr.mxu0 0.0
    %1768 = vmatpush1.msra.mxu0 0.0
    %1769 = vmatprep.subr.mxu0 0.0
    %1770 = vmatpush1.msra.mxu0 0.0
    %1771 = vmatprep.subr.mxu0 0.0
    %1772 = vmatpush1.msra.mxu0 0.0
    %1773 = vmatprep.subr.mxu0 0.0
    %1774 = vmatpush1.msra.mxu0 0.0
    %1775 = vmatprep.subr.mxu0 0.0
    %1776 = vmatpush1.msra.mxu0 0.0
    %1777 = vmatprep.subr.mxu0 0.0
    %1778 = vmatpush1.msra.mxu0 0.0
    %1779 = vmatprep.subr.mxu0 0.0
    %1780 = vmatpush1.msra.mxu0 0.0
    %1781 = vmatprep.subr.mxu0 0.0
    %1782 = vmatpush1.msra.mxu0 0.0
    %1783 = vmatprep.subr.mxu0 0.0
    %1784 = vmatpush1.msra.mxu0 0.0
    %1785 = vmatprep.subr.mxu0 0.0
    %1786 = vmatpush1.msra.mxu0 0.0
    %1787 = vmatprep.subr.mxu0 0.0
    %1788 = vmatpush1.msra.mxu0 0.0
    %1789 = vmatprep.subr.mxu0 0.0
    %1790 = vmatpush1.msra.mxu0 0.0
    %1791 = vmatprep.subr.mxu0 0.0
    %1792 = vmatpush1.msra.mxu0 0.0
    %1793 = vmatprep.subr.mxu0 0.0
    %1794 = vmatpush1.msra.mxu0 0.0
    %1795 = vmatprep.subr.mxu0 0.0
    %1796 = vmatpush1.msra.mxu0 0.0
    %1797 = vmatprep.subr.mxu0 0.0
    %1798 = vmatpush1.msra.mxu0 0.0
    %1799 = vmatprep.subr.mxu0 0.0
    %1800 = vmatpush1.msra.mxu0 0.0
    %1801 = vmatprep.subr.mxu0 0.0
    %1802 = vmatpush1.msra.mxu0 0.0
    %1803 = vmatprep.subr.mxu0 0.0
    %1804 = vmatpush1.msra.mxu0 0.0
    %1805 = vmatprep.subr.mxu0 0.0
    %1806 = vmatpush1.msra.mxu0 0.0
    %1807 = vmatprep.subr.mxu0 0.0
    %1808 = vmatpush1.msra.mxu0 0.0
    %1809 = vmatprep.subr.mxu0 0.0
    %1810 = vmatpush1.msra.mxu0 0.0
    %1811 = vmatprep.mubr.f32.mxu0 0.0
    %1812 = vmatmul.mubr.f32.gmra.mrb[0].mxu0 %v1745
    %v1813 = vpop.f32.mrb[0].mxu0
    %v1814 = vadd.f32 %v1738, %v1813
    %v1815 = vpop.f32.mrb[0].mxu0
    %1816 = vdwg.mxu0
    %v1817 = vadd.f32 %v1814, %v218
    %v1818 = vxor.u32 %v1817, 2147483648
    %v1819 = vmul.f32 %v1818, 1.442695
    %v1820 = vpow.pop %v1819
    %v1821 = vadd.f32 %v1820, 1.0
    %v1822 = vrcp.pop %v1821
    %v1823 = vmul.f32 1.0, %v1822
    %v1824 = vtanh.pop %v1817
    %v1825 = vmul.f32 %v1823, %v1386
    %1827 = vrot.lane.b32.xlu0 %v1824, 32
    %v1828 = vpop.permute.xlu0 %1827
    %v1830 = vmul.f32 %v1823, %v1828
    %1832 = vrot.lane.b32.xlu0 %v1830, 32
    %v1833 = vpop.permute.xlu0 %1832
    %v1835 = vadd.f32 %v1825, %v1833
    %v1836 = vtanh.pop %v1835
    %1838 = vrot.lane.b32.xlu0 %v1836, 32
    %v1839 = vpop.permute.xlu0 %1838
    %v1841 = vmul.f32 %v1823, %v1839
    %v1842 = vsel %vm132, %v1567, 0
    %1844 = vmatprep.subr.mxu0 0.0
    %1845 = vmatpush1.msra.mxu0 %v223
    %1846 = vmatprep.subr.mxu0 0.0
    %1847 = vmatpush1.msra.mxu0 %v224
    %1848 = vmatprep.subr.mxu0 0.0
    %1849 = vmatpush1.msra.mxu0 %v225
    %1850 = vmatprep.subr.mxu0 0.0
    %1851 = vmatpush1.msra.mxu0 %v226
    %1852 = vmatprep.subr.mxu0 0.0
    %1853 = vmatpush1.msra.mxu0 0.0
    %1854 = vmatprep.subr.mxu0 0.0
    %1855 = vmatpush1.msra.mxu0 0.0
    %1856 = vmatprep.subr.mxu0 0.0
    %1857 = vmatpush1.msra.mxu0 0.0
    %1858 = vmatprep.subr.mxu0 0.0
    %1859 = vmatpush1.msra.mxu0 0.0
    %1860 = vmatprep.subr.mxu0 0.0
    %1861 = vmatpush1.msra.mxu0 0.0
    %1862 = vmatprep.subr.mxu0 0.0
    %1863 = vmatpush1.msra.mxu0 0.0
    %1864 = vmatprep.subr.mxu0 0.0
    %1865 = vmatpush1.msra.mxu0 0.0
    %1866 = vmatprep.subr.mxu0 0.0
    %1867 = vmatpush1.msra.mxu0 0.0
    %1868 = vmatprep.subr.mxu0 0.0
    %1869 = vmatpush1.msra.mxu0 0.0
    %1870 = vmatprep.subr.mxu0 0.0
    %1871 = vmatpush1.msra.mxu0 0.0
    %1872 = vmatprep.subr.mxu0 0.0
    %1873 = vmatpush1.msra.mxu0 0.0
    %1874 = vmatprep.subr.mxu0 0.0
    %1875 = vmatpush1.msra.mxu0 0.0
    %1876 = vmatprep.subr.mxu0 0.0
    %1877 = vmatpush1.msra.mxu0 0.0
    %1878 = vmatprep.subr.mxu0 0.0
    %1879 = vmatpush1.msra.mxu0 0.0
    %1880 = vmatprep.subr.mxu0 0.0
    %1881 = vmatpush1.msra.mxu0 0.0
    %1882 = vmatprep.subr.mxu0 0.0
    %1883 = vmatpush1.msra.mxu0 0.0
    %1884 = vmatprep.subr.mxu0 0.0
    %1885 = vmatpush1.msra.mxu0 0.0
    %1886 = vmatprep.subr.mxu0 0.0
    %1887 = vmatpush1.msra.mxu0 0.0
    %1888 = vmatprep.subr.mxu0 0.0
    %1889 = vmatpush1.msra.mxu0 0.0
    %1890 = vmatprep.subr.mxu0 0.0
    %1891 = vmatpush1.msra.mxu0 0.0
    %1892 = vmatprep.subr.mxu0 0.0
    %1893 = vmatpush1.msra.mxu0 0.0
    %1894 = vmatprep.subr.mxu0 0.0
    %1895 = vmatpush1.msra.mxu0 0.0
    %1896 = vmatprep.subr.mxu0 0.0
    %1897 = vmatpush1.msra.mxu0 0.0
    %1898 = vmatprep.subr.mxu0 0.0
    %1899 = vmatpush1.msra.mxu0 0.0
    %1900 = vmatprep.subr.mxu0 0.0
    %1901 = vmatpush1.msra.mxu0 0.0
    %1902 = vmatprep.subr.mxu0 0.0
    %1903 = vmatpush1.msra.mxu0 0.0
    %1904 = vmatprep.subr.mxu0 0.0
    %1905 = vmatpush1.msra.mxu0 0.0
    %1906 = vmatprep.subr.mxu0 0.0
    %1907 = vmatpush1.msra.mxu0 0.0
    %1908 = vmatprep.mubr.f32.mxu0 0.0
    %1909 = vmatmul.mubr.f32.gmra.mrb[0].mxu0 %v1842
    %v1910 = vpop.f32.mrb[0].mxu0
    %v1911 = vadd.f32 0.0, %v1910
    %v1912 = vpop.f32.mrb[0].mxu0
    %1913 = vdwg.mxu0
    %1915 = vrot.lane.b32.xlu0 %v1841, 64
    %v1916 = vpop.permute.xlu0 %1915
    %v1917 = vsel %vm132, %v1916, 0
    %1919 = vmatprep.subr.mxu0 0.0
    %1920 = vmatpush1.msra.mxu0 %v219
    %1921 = vmatprep.subr.mxu0 0.0
    %1922 = vmatpush1.msra.mxu0 %v220
    %1923 = vmatprep.subr.mxu0 0.0
    %1924 = vmatpush1.msra.mxu0 %v221
    %1925 = vmatprep.subr.mxu0 0.0
    %1926 = vmatpush1.msra.mxu0 %v222
    %1927 = vmatprep.subr.mxu0 0.0
    %1928 = vmatpush1.msra.mxu0 0.0
    %1929 = vmatprep.subr.mxu0 0.0
    %1930 = vmatpush1.msra.mxu0 0.0
    %1931 = vmatprep.subr.mxu0 0.0
    %1932 = vmatpush1.msra.mxu0 0.0
    %1933 = vmatprep.subr.mxu0 0.0
    %1934 = vmatpush1.msra.mxu0 0.0
    %1935 = vmatprep.subr.mxu0 0.0
    %1936 = vmatpush1.msra.mxu0 0.0
    %1937 = vmatprep.subr.mxu0 0.0
    %1938 = vmatpush1.msra.mxu0 0.0
    %1939 = vmatprep.subr.mxu0 0.0
    %1940 = vmatpush1.msra.mxu0 0.0
    %1941 = vmatprep.subr.mxu0 0.0
    %1942 = vmatpush1.msra.mxu0 0.0
    %1943 = vmatprep.subr.mxu0 0.0
    %1944 = vmatpush1.msra.mxu0 0.0
    %1945 = vmatprep.subr.mxu0 0.0
    %1946 = vmatpush1.msra.mxu0 0.0
    %1947 = vmatprep.subr.mxu0 0.0
    %1948 = vmatpush1.msra.mxu0 0.0
    %1949 = vmatprep.subr.mxu0 0.0
    %1950 = vmatpush1.msra.mxu0 0.0
    %1951 = vmatprep.subr.mxu0 0.0
    %1952 = vmatpush1.msra.mxu0 0.0
    %1953 = vmatprep.subr.mxu0 0.0
    %1954 = vmatpush1.msra.mxu0 0.0
    %1955 = vmatprep.subr.mxu0 0.0
    %1956 = vmatpush1.msra.mxu0 0.0
    %1957 = vmatprep.subr.mxu0 0.0
    %1958 = vmatpush1.msra.mxu0 0.0
    %1959 = vmatprep.subr.mxu0 0.0
    %1960 = vmatpush1.msra.mxu0 0.0
    %1961 = vmatprep.subr.mxu0 0.0
    %1962 = vmatpush1.msra.mxu0 0.0
    %1963 = vmatprep.subr.mxu0 0.0
    %1964 = vmatpush1.msra.mxu0 0.0
    %1965 = vmatprep.subr.mxu0 0.0
    %1966 = vmatpush1.msra.mxu0 0.0
    %1967 = vmatprep.subr.mxu0 0.0
    %1968 = vmatpush1.msra.mxu0 0.0
    %1969 = vmatprep.subr.mxu0 0.0
    %1970 = vmatpush1.msra.mxu0 0.0
    %1971 = vmatprep.subr.mxu0 0.0
    %1972 = vmatpush1.msra.mxu0 0.0
    %1973 = vmatprep.subr.mxu0 0.0
    %1974 = vmatpush1.msra.mxu0 0.0
    %1975 = vmatprep.subr.mxu0 0.0
    %1976 = vmatpush1.msra.mxu0 0.0
    %1977 = vmatprep.subr.mxu0 0.0
    %1978 = vmatpush1.msra.mxu0 0.0
    %1979 = vmatprep.subr.mxu0 0.0
    %1980 = vmatpush1.msra.mxu0 0.0
    %1981 = vmatprep.subr.mxu0 0.0
    %1982 = vmatpush1.msra.mxu0 0.0
    %1983 = vmatprep.mubr.f32.mxu0 0.0
    %1984 = vmatmul.mubr.f32.gmra.mrb[0].mxu0 %v1917
    %v1985 = vpop.f32.mrb[0].mxu0
    %v1986 = vadd.f32 %v1911, %v1985
    %v1987 = vpop.f32.mrb[0].mxu0
    %1988 = vdwg.mxu0
    %v1989 = vadd.f32 %v1986, %v227
    %v1990 = vxor.u32 %v1989, 2147483648
    %v1991 = vmul.f32 %v1990, 1.442695
    %v1992 = vpow.pop %v1991
    %v1993 = vadd.f32 %v1992, 1.0
    %v1994 = vrcp.pop %v1993
    %v1995 = vmul.f32 1.0, %v1994
    %v1996 = vtanh.pop %v1989
    %v1997 = vmul.f32 %v1995, %v1558
    %1999 = vrot.lane.b32.xlu0 %v1996, 32
    %v2000 = vpop.permute.xlu0 %1999
    %v2002 = vmul.f32 %v1995, %v2000
    %2004 = vrot.lane.b32.xlu0 %v2002, 32
    %v2005 = vpop.permute.xlu0 %2004
    %v2007 = vadd.f32 %v1997, %v2005
    %v2008 = vtanh.pop %v2007
    %2010 = vrot.lane.b32.xlu0 %v2008, 32
    %v2011 = vpop.permute.xlu0 %2010
    %v2013 = vmul.f32 %v1995, %v2011
    %2015 = vrot.lane.b32.xlu0 %v2013, 64
    %v2016 = vpop.permute.xlu0 %2015
    %2018 = vst.msk [vmem:[#allocation2 + $0x3] sm:$0x1] %vm670, %v2016
    %v2019 = vld [vmem:[#allocation2] sm:$0xf]
    %v2020 = vld [vmem:[%s10] sm:$0xff]
    %v2021 = vld [vmem:[%s10 + $0x8] sm:$0xff]
    %v2022 = vld [vmem:[%s10 + $0x10] sm:$0xff]
    %v2023 = vld [vmem:[%s10 + $0x18] sm:$0xff]
    %v2024 = vld [vmem:[%s11] sm:$0x1]
    %v2026 = vlaneseq
    %v2027 = vshrl.u32 %v2026, 7
    %v2028 = vsub.s32 0, %v2027
    %v2029 = vrot.slane %v2024, %v2028
    %v2032 = vsel %vm132, %v2019, 0
    %2034 = vmatprep.subr.mxu0 0.0
    %2035 = vmatpush1.msra.mxu0 %v2020
    %2036 = vmatprep.subr.mxu0 0.0
    %2037 = vmatpush1.msra.mxu0 %v2021
    %2038 = vmatprep.subr.mxu0 0.0
    %2039 = vmatpush1.msra.mxu0 %v2022
    %2040 = vmatprep.subr.mxu0 0.0
    %2041 = vmatpush1.msra.mxu0 %v2023
    %2042 = vmatprep.subr.mxu0 0.0
    %2043 = vmatpush1.msra.mxu0 0.0
    %2044 = vmatprep.subr.mxu0 0.0
    %2045 = vmatpush1.msra.mxu0 0.0
    %2046 = vmatprep.subr.mxu0 0.0
    %2047 = vmatpush1.msra.mxu0 0.0
    %2048 = vmatprep.subr.mxu0 0.0
    %2049 = vmatpush1.msra.mxu0 0.0
    %2050 = vmatprep.subr.mxu0 0.0
    %2051 = vmatpush1.msra.mxu0 0.0
    %2052 = vmatprep.subr.mxu0 0.0
    %2053 = vmatpush1.msra.mxu0 0.0
    %2054 = vmatprep.subr.mxu0 0.0
    %2055 = vmatpush1.msra.mxu0 0.0
    %2056 = vmatprep.subr.mxu0 0.0
    %2057 = vmatpush1.msra.mxu0 0.0
    %2058 = vmatprep.subr.mxu0 0.0
    %2059 = vmatpush1.msra.mxu0 0.0
    %2060 = vmatprep.subr.mxu0 0.0
    %2061 = vmatpush1.msra.mxu0 0.0
    %2062 = vmatprep.subr.mxu0 0.0
    %2063 = vmatpush1.msra.mxu0 0.0
    %2064 = vmatprep.subr.mxu0 0.0
    %2065 = vmatpush1.msra.mxu0 0.0
    %2066 = vmatprep.subr.mxu0 0.0
    %2067 = vmatpush1.msra.mxu0 0.0
    %2068 = vmatprep.subr.mxu0 0.0
    %2069 = vmatpush1.msra.mxu0 0.0
    %2070 = vmatprep.subr.mxu0 0.0
    %2071 = vmatpush1.msra.mxu0 0.0
    %2072 = vmatprep.subr.mxu0 0.0
    %2073 = vmatpush1.msra.mxu0 0.0
    %2074 = vmatprep.subr.mxu0 0.0
    %2075 = vmatpush1.msra.mxu0 0.0
    %2076 = vmatprep.subr.mxu0 0.0
    %2077 = vmatpush1.msra.mxu0 0.0
    %2078 = vmatprep.subr.mxu0 0.0
    %2079 = vmatpush1.msra.mxu0 0.0
    %2080 = vmatprep.subr.mxu0 0.0
    %2081 = vmatpush1.msra.mxu0 0.0
    %2082 = vmatprep.subr.mxu0 0.0
    %2083 = vmatpush1.msra.mxu0 0.0
    %2084 = vmatprep.subr.mxu0 0.0
    %2085 = vmatpush1.msra.mxu0 0.0
    %2086 = vmatprep.subr.mxu0 0.0
    %2087 = vmatpush1.msra.mxu0 0.0
    %2088 = vmatprep.subr.mxu0 0.0
    %2089 = vmatpush1.msra.mxu0 0.0
    %2090 = vmatprep.subr.mxu0 0.0
    %2091 = vmatpush1.msra.mxu0 0.0
    %2092 = vmatprep.subr.mxu0 0.0
    %2093 = vmatpush1.msra.mxu0 0.0
    %2094 = vmatprep.subr.mxu0 0.0
    %2095 = vmatpush1.msra.mxu0 0.0
    %2096 = vmatprep.subr.mxu0 0.0
    %2097 = vmatpush1.msra.mxu0 0.0
    %2098 = vmatprep.mubr.f32.mxu0 0.0
    %2099 = vmatmul.mubr.f32.gmra.mrb[0].mxu0 %v2032
    %v2100 = vpop.f32.mrb[0].mxu0
    %v2101 = vadd.f32 %v2029, %v2100
    %v2102 = vpop.f32.mrb[0].mxu0
    %2103 = vdwg.mxu0
    %vm2104 = vcmask 60416
    %2105 = vst.msk [vmem:[#allocation14] sm:$0xf] %vm2104, %v2101
    // Predicated region
    $region74: #{tpu_custom_call.1} parent=1 // pred_check
      _
    $region75: #{tpu_custom_call.1} parent=1 // pred_check_branch
      %2107 = sbr.rel (0) target = $region77
    $region76: #{tpu_custom_call.1} parent=1 // pred_region
      %s2109 = ssub.s32 64, 64
      %2110 = vsyncadd [#allocation5], %s2109
      %s2112 = sshll.u32 [#allocation14], 4
      %s2113 = int_to_ptr.vmem [resolvable:$true] %s2112
      %2115 = dma.vmem_to_hbm [thread:$0]  %s2113, 64, %s12, [#allocation5]
    $region77: #{tpu_custom_call.1} parent=1 // pred_fallthru
      _
    // Predicated region
    $region78: #{tpu_custom_call.1} parent=1 // pred_check
      _
    $region79: #{tpu_custom_call.1} parent=1 // pred_check_branch
      %2117 = sbr.rel (0) target = $region81
    $region80: #{tpu_custom_call.1} parent=1 // pred_region
      %2118 = dma.done [#allocation5], 64
    $region81: #{tpu_custom_call.1} parent=1 // pred_fallthru
      _
    %2119 = vsyncpa [#allocation4], 1
    %2120 = vsyncpa [#allocation7], 1
    %2121 = vsyncpa [#allocation10], 1
    %2122 = vsyncpa [#allocation13], 1
    %2123 = vsyncpa [#allocation5], 1

</llo_original>
